<compile_context>
chip_gen: v7x
topology: tpu7x:2x2x1
jax: 0.10.0
libtpu: 0.0.40
codegen_flags: <defaults>
</compile_context>

<pallas_src>
import jax
import jax.numpy as jnp
from jax import lax
from jax.experimental import pallas as pl
from jax.experimental.pallas import tpu as pltpu

_LANE = 128
_SUBLANE = 8


def _round_up(x, m):
    return ((x + m - 1) // m) * m


def make_block_kernel(H, W, stride, residual):
    """Fused Block kernel for one (H, W, stride, residual) configuration."""
    Ho = (H - 1) // stride + 1  # = (H + 2*pad - k)//stride + 1, pad=1, k=3
    Wo = (W - 1) // stride + 1

    def kernel(x_ref, w1_ref, b1_ref, wd_ref, b2_ref, w2_ref, b3_ref,
               o_ref, *scratch):
        Hp, Wp, Cin = x_ref.shape          # spatially pre-padded input block
        Cexp = w1_ref.shape[1]

        xp = x_ref[...]                    # (Hp, Wp, Cin), mxu operand dtype

        # ---- 1x1 expand conv (BN scale folded into w1) + bias + ReLU6 ----
        # Wp is a multiple of 8, so this reshape is layout-preserving.
        h = jnp.dot(xp.reshape(Hp * Wp, Cin), w1_ref[...],
                    preferred_element_type=jnp.float32)
        h = jnp.clip(h + b1_ref[...], 0.0, 6.0)
        hp = h.reshape(Hp, Wp, Cexp)

        # Zero the halo (and right-alignment columns): the depthwise conv in
        # the reference zero-pads its *input*, so everything outside the valid
        # HxW interior must be exactly 0, not relu6(b1).
        ri = lax.broadcasted_iota(jnp.int32, (Hp, Wp, Cexp), 0)
        ci = lax.broadcasted_iota(jnp.int32, (Hp, Wp, Cexp), 1)
        inside = (ri >= 1) & (ri <= H) & (ci >= 1) & (ci <= W)
        hp = jnp.where(inside, hp, 0.0)

        # ---- depthwise 3x3 (padding=1, given stride) + bias + ReLU6 ----
        wd = wd_ref[...]                   # (9, Cexp): single load of the taps
        acc = None
        if stride == 1:
            for di in range(3):
                for dj in range(3):
                    k = di * 3 + dj
                    tap = hp[di:di + Ho, dj:dj + Wo, :] * wd[k:k + 1]
                    acc = tap if acc is None else acc + tap
        else:
            # stride > 1 fallback: park hp in VMEM and use strided reads.
            # TODO(synk): replace with a band loop to avoid strided sublane reads.
            hp_scr, = scratch
            hp_scr[...] = hp
            for di in range(3):
                for dj in range(3):
                    k = di * 3 + dj
                    tap = (hp_scr[pl.ds(di, Ho, stride),
                                  pl.ds(dj, Wo, stride), :] * wd[k:k + 1])
                    acc = tap if acc is None else acc + tap
        h2 = jnp.clip(acc + b2_ref[...], 0.0, 6.0)

        # ---- 1x1 project conv (BN scale folded into w2) + bias [+ residual] ----
        out = jnp.dot(h2.reshape(Ho * Wo, Cexp).astype(w2_ref.dtype),
                      w2_ref[...], preferred_element_type=jnp.float32)
        out = out + b3_ref[...]
        if residual:
            x_int = xp[1:H + 1, 1:W + 1, :].astype(jnp.float32)
            out = out + x_int.reshape(H * W, Cin)
        o_ref[...] = out.astype(o_ref.dtype)

    return kernel


def mobile_block_forward(x_nhwc, params, *, stride, residual,
                         mxu_dtype=jnp.float32):
    """x_nhwc: (N, H, W, Cin) float32.  Returns (N, Ho, Wo, Cout) float32.

    mxu_dtype: dtype of the two 1x1-conv matmul operands (accumulation is
    always f32).  jnp.bfloat16 is recommended on v6e/v7x.
    """
    w1, s1, b1, wd, s2, b2, w2, s3, b3 = params
    N, H, W, Cin = x_nhwc.shape
    Cexp = w1.shape[1]
    Cout = w2.shape[1]
    Ho = (H - 1) // stride + 1
    Wo = (W - 1) // stride + 1

    # Lane-dense channel padding + sublane-aligned padded width.
    Cin_p = _round_up(Cin, _LANE)
    Cexp_p = _round_up(Cexp, _LANE)
    Cout_p = _round_up(Cout, _LANE)
    Hp = H + 2
    Wp = _round_up(W + 2, _SUBLANE)

    f32 = jnp.float32
    # Fold BN scales into the conv weights (constants), zero-pad channels.
    w1p = jnp.zeros((Cin_p, Cexp_p), f32).at[:Cin, :Cexp].set(w1 * s1)
    wdp = jnp.zeros((9, Cexp_p), f32).at[:, :Cexp].set(wd * s2)
    w2p = jnp.zeros((Cexp_p, Cout_p), f32).at[:Cexp, :Cout].set(w2 * s3)
    b1p = jnp.zeros((1, Cexp_p), f32).at[:, :Cexp].set(b1)
    b2p = jnp.zeros((1, Cexp_p), f32).at[:, :Cexp].set(b2)
    b3p = jnp.zeros((1, Cout_p), f32).at[:, :Cout].set(b3)
    w1p = w1p.astype(mxu_dtype)
    w2p = w2p.astype(mxu_dtype)

    # Spatial pre-pad (1-pixel halo; right edge rounded up to a sublane
    # multiple) + channel pad to a lane multiple.
    xpad = jnp.pad(
        x_nhwc,
        ((0, 0), (1, 1), (1, Wp - W - 1), (0, Cin_p - Cin))).astype(mxu_dtype)

    kernel = make_block_kernel(H, W, stride, residual)
    scratch = []
    if stride != 1:
        scratch = [pltpu.VMEM((Hp, Wp, Cexp_p), f32)]

    const2d = lambda n: (0, 0)
    out_flat = pl.pallas_call(
        kernel,
        out_shape=jax.ShapeDtypeStruct((N, Ho * Wo, Cout_p), f32),
        grid_spec=pltpu.PrefetchScalarGridSpec(
            num_scalar_prefetch=0,
            grid=(N,),
            in_specs=[
                pl.BlockSpec((pl.Squeezed(), Hp, Wp, Cin_p),
                             lambda n: (n, 0, 0, 0)),
                pl.BlockSpec((Cin_p, Cexp_p), const2d),    # w1 (scale folded)
                pl.BlockSpec((1, Cexp_p), const2d),        # b1
                pl.BlockSpec((9, Cexp_p), const2d),        # wd (scale folded)
                pl.BlockSpec((1, Cexp_p), const2d),        # b2
                pl.BlockSpec((Cexp_p, Cout_p), const2d),   # w2 (scale folded)
                pl.BlockSpec((1, Cout_p), const2d),        # b3
            ],
            out_specs=pl.BlockSpec((pl.Squeezed(), Ho * Wo, Cout_p),
                                   lambda n: (n, 0, 0)),
            scratch_shapes=scratch,
        ),
        compiler_params=pltpu.CompilerParams(
            dimension_semantics=("parallel",),
            vmem_limit_bytes=32 * 1024 * 1024),
    )(xpad, w1p, b1p, wdp, b2p, w2p, b3p)

    # Lane-dense slab -> NHWC, drop channel padding (free reshape/slice).
    return out_flat.reshape(N, Ho, Wo, Cout_p)[..., :Cout]


def init_block_params(key, *, p_c, i, t, c, n, s):
    """Deterministic parameters matching Block(p_c, i, t, c, n, s) shapes."""
    last = (i == n - 1)
    _s = s if last else 1
    _c = c if last else p_c
    _p_c = p_c * t
    k = jax.random.split(key, 6)

    def bn(kk, ch):
        k1, k2, k3, k4 = jax.random.split(kk, 4)
        gamma = jax.random.uniform(k1, (ch,), minval=0.5, maxval=1.5)
        beta = 0.1 * jax.random.normal(k2, (ch,))
        mean = 0.1 * jax.random.normal(k3, (ch,))
        var = jax.random.uniform(k4, (ch,), minval=0.5, maxval=1.5)
        scale = gamma / jnp.sqrt(var + 1e-5)
        bias = beta - mean * scale
        return (scale.reshape(1, ch).astype(jnp.float32),
                bias.reshape(1, ch).astype(jnp.float32))

    w1 = (0.3 * jax.random.normal(k[0], (p_c, _p_c))).astype(jnp.float32)
    s1, b1 = bn(k[1], _p_c)
    wd = (0.3 * jax.random.normal(k[2], (9, _p_c))).astype(jnp.float32)
    s2, b2 = bn(k[3], _p_c)
    w2 = (0.3 * jax.random.normal(k[4], (_p_c, _c))).astype(jnp.float32)
    s3, b3 = bn(k[5], _c)
    params = (w1, s1, b1, wd, s2, b2, w2, s3, b3)
    return params, _s, _c, (not last)


def ref_block(x_nhwc, params, stride, residual, mxu_dtype=jnp.float32):
    """Pure-JAX reference mirroring the PyTorch forward (eval-mode BN)."""
    w1, s1, b1, wd, s2, b2, w2, s3, b3 = params
    N, H, W, _ = x_nhwc.shape
    f32 = jnp.float32
    q = lambda a: a.astype(mxu_dtype).astype(f32)
    xq = q(x_nhwc)
    h = jnp.clip(jnp.einsum("nhwc,cd->nhwd", xq, q(w1 * s1)) + b1, 0.0, 6.0)
    hpad = jnp.pad(h, ((0, 0), (1, 1), (1, 1), (0, 0)))
    Ho = (H - 1) // stride + 1
    Wo = (W - 1) // stride + 1
    acc = jnp.zeros((N, Ho, Wo, h.shape[-1]), f32)
    wdf = wd * s2
    for di in range(3):
        for dj in range(3):
            patch = hpad[:, di:di + (Ho - 1) * stride + 1:stride,
                         dj:dj + (Wo - 1) * stride + 1:stride, :]
            acc = acc + patch * wdf[di * 3 + dj]
    h2 = jnp.clip(acc + b2, 0.0, 6.0)
    out = jnp.einsum("nhwc,cd->nhwd", q(h2), q(w2 * s3)) + b3
    if residual:
        out = out + xq
    return out


if __name__ == "__main__":
    key = jax.random.PRNGKey(0)
    kx, kp1, kp2 = jax.random.split(key, 3)

    # Input: PyTorch NCHW (2, 8, 16, 16)  ->  NHWC (2, 16, 16, 8) here.
    x = jax.random.normal(kx, (2, 16, 16, 8), jnp.float32)

    # Config A: intermediate block (i != n-1) -> stride forced to 1,
    # out channels = p_c, residual add.  Block(p_c=8, i=0, t=2, c=16, n=2, s=2)
    pA, strideA, cA, resA = init_block_params(kp1, p_c=8, i=0, t=2, c=16, n=2, s=2)
    yA = mobile_block_forward(x, pA, stride=strideA, residual=resA)
    jax.block_until_ready(yA)
    refA = ref_block(x, pA, strideA, resA)
    assert yA.shape == (2, 16, 16, 8)
    assert float(jnp.max(jnp.abs(yA - refA))) < 1e-3

    # Config B: last block (i == n-1) -> out channels = c, no residual.
    # Block(p_c=8, i=1, t=2, c=16, n=2, s=1)
    pB, strideB, cB, resB = init_block_params(kp2, p_c=8, i=1, t=2, c=16, n=2, s=1)
    yB = mobile_block_forward(x, pB, stride=strideB, residual=resB)
    jax.block_until_ready(yB)
    refB = ref_block(x, pB, strideB, resB)
    assert yB.shape == (2, 16, 16, 16)
    assert float(jnp.max(jnp.abs(yB - refB))) < 1e-3

    # bf16 MXU-operand variant (recommended on v6e/v7x): same kernel, matmul
    # operands in bf16 with f32 accumulation; checked against the f32
    # reference with a bf16-appropriate (~5% relative) tolerance.
    yB16 = mobile_block_forward(x, pB, stride=strideB, residual=resB,
                                mxu_dtype=jnp.bfloat16)
    jax.block_until_ready(yB16)
    err = float(jnp.max(jnp.abs(yB16 - refB)))
    tol = 0.05 * float(jnp.max(jnp.abs(refB))) + 0.05
    assert err < tol, (err, tol)

    print("KERNEL_OK")
</pallas_src>

<mosaic_0001>
module attributes {stable_mosaic.version = 11 : i64} {
  func.func @kernel(%arg0: i32, %arg1: memref<1x18x24x128xf32, #tpu.memory_space<vmem>>, %arg2: memref<128x128xf32, #tpu.memory_space<vmem>>, %arg3: memref<1x128xf32, #tpu.memory_space<vmem>>, %arg4: memref<9x128xf32, #tpu.memory_space<vmem>>, %arg5: memref<1x128xf32, #tpu.memory_space<vmem>>, %arg6: memref<128x128xf32, #tpu.memory_space<vmem>>, %arg7: memref<1x128xf32, #tpu.memory_space<vmem>>, %arg8: memref<1x256x128xf32, #tpu.memory_space<vmem>>) attributes {dimension_semantics = [#tpu.dimension_semantics<parallel>], iteration_bounds = array<i64: 2>, scalar_prefetch = 0 : i64, scratch_operands = 0 : i64, tpu.core_type = #tpu.core_type<tc>, window_params = [{transform_indices = @transform_0, window_bounds = array<i64: 1, 18, 24, 128>}, {pipeline_mode = #tpu.pipeline_mode<synchronous>, transform_indices = @transform_1, window_bounds = array<i64: 128, 128>}, {pipeline_mode = #tpu.pipeline_mode<synchronous>, transform_indices = @transform_2, window_bounds = array<i64: 1, 128>}, {pipeline_mode = #tpu.pipeline_mode<synchronous>, transform_indices = @transform_3, window_bounds = array<i64: 9, 128>}, {pipeline_mode = #tpu.pipeline_mode<synchronous>, transform_indices = @transform_4, window_bounds = array<i64: 1, 128>}, {pipeline_mode = #tpu.pipeline_mode<synchronous>, transform_indices = @transform_5, window_bounds = array<i64: 128, 128>}, {pipeline_mode = #tpu.pipeline_mode<synchronous>, transform_indices = @transform_6, window_bounds = array<i64: 1, 128>}, {transform_indices = @transform_7, window_bounds = array<i64: 1, 256, 128>}]} {
    %c0 = arith.constant 0 : index
    %c0_0 = arith.constant 0 : index
    %c0_1 = arith.constant 0 : index
    %c0_2 = arith.constant 0 : index
    %0 = vector.load %arg1[%c0, %c0_0, %c0_1, %c0_2] : memref<1x18x24x128xf32, #tpu.memory_space<vmem>>, vector<1x18x24x128xf32>
    %1 = vector.shape_cast %0 : vector<1x18x24x128xf32> to vector<18x24x128xf32>
    %2 = vector.shape_cast %1 : vector<18x24x128xf32> to vector<432x128xf32>
    %c0_3 = arith.constant 0 : index
    %c0_4 = arith.constant 0 : index
    %3 = vector.load %arg2[%c0_3, %c0_4] : memref<128x128xf32, #tpu.memory_space<vmem>>, vector<128x128xf32>
    %cst = arith.constant dense<0.000000e+00> : vector<432x128xf32>
    %4 = tpu.matmul %2, %3, %cst {dimension_numbers = #tpu.dot_dimension_numbers<[1], [0], [0], [1], [0, 0, 1, 1], [], []>} : vector<432x128xf32>, vector<128x128xf32>, vector<432x128xf32> -> vector<432x128xf32>
    %c0_5 = arith.constant 0 : index
    %c0_6 = arith.constant 0 : index
    %5 = vector.load %arg3[%c0_5, %c0_6] : memref<1x128xf32, #tpu.memory_space<vmem>>, vector<1x128xf32>
    %6 = vector.broadcast %5 : vector<1x128xf32> to vector<432x128xf32>
    %7 = arith.addf %4, %6 : vector<432x128xf32>
    %cst_7 = arith.constant 0.000000e+00 : f32
    %cst_8 = arith.constant 6.000000e+00 : f32
    %8 = vector.broadcast %cst_7 : f32 to vector<432x128xf32>
    %9 = arith.maximumf %8, %7 : vector<432x128xf32>
    %10 = vector.broadcast %cst_8 : f32 to vector<432x128xf32>
    %11 = arith.minimumf %10, %9 : vector<432x128xf32>
    %12 = vector.shape_cast %11 : vector<432x128xf32> to vector<18x24x128xf32>
    %13 = tpu.iota {dimensions = array<i32: 0>} : vector<18x24x128xi32>
    %14 = tpu.iota {dimensions = array<i32: 1>} : vector<18x24x128xi32>
    %c1_i32 = arith.constant 1 : i32
    %15 = vector.broadcast %c1_i32 : i32 to vector<18x24x128xi32>
    %16 = arith.cmpi sge, %13, %15 : vector<18x24x128xi32>
    %c16_i32 = arith.constant 16 : i32
    %17 = vector.broadcast %c16_i32 : i32 to vector<18x24x128xi32>
    %18 = arith.cmpi sle, %13, %17 : vector<18x24x128xi32>
    %19 = arith.andi %16, %18 : vector<18x24x128xi1>
    %c1_i32_9 = arith.constant 1 : i32
    %20 = vector.broadcast %c1_i32_9 : i32 to vector<18x24x128xi32>
    %21 = arith.cmpi sge, %14, %20 : vector<18x24x128xi32>
    %22 = arith.andi %19, %21 : vector<18x24x128xi1>
    %c16_i32_10 = arith.constant 16 : i32
    %23 = vector.broadcast %c16_i32_10 : i32 to vector<18x24x128xi32>
    %24 = arith.cmpi sle, %14, %23 : vector<18x24x128xi32>
    %25 = arith.andi %22, %24 : vector<18x24x128xi1>
    %cst_11 = arith.constant 0.000000e+00 : f32
    %26 = vector.broadcast %cst_11 : f32 to vector<18x24x128xf32>
    %27 = arith.select %25, %12, %26 : vector<18x24x128xi1>, vector<18x24x128xf32>
    %c0_12 = arith.constant 0 : index
    %c0_13 = arith.constant 0 : index
    %28 = vector.load %arg4[%c0_12, %c0_13] : memref<9x128xf32, #tpu.memory_space<vmem>>, vector<9x128xf32>
    %29 = vector.extract_strided_slice %27 {offsets = [0, 0, 0], sizes = [16, 16, 128], strides = [1, 1, 1]} : vector<18x24x128xf32> to vector<16x16x128xf32>
    %30 = vector.extract_strided_slice %28 {offsets = [0, 0], sizes = [1, 128], strides = [1, 1]} : vector<9x128xf32> to vector<1x128xf32>
    %31 = vector.shape_cast %30 : vector<1x128xf32> to vector<1x1x128xf32>
    %32 = vector.broadcast %31 : vector<1x1x128xf32> to vector<16x16x128xf32>
    %33 = arith.mulf %29, %32 : vector<16x16x128xf32>
    %34 = vector.extract_strided_slice %27 {offsets = [0, 1, 0], sizes = [16, 16, 128], strides = [1, 1, 1]} : vector<18x24x128xf32> to vector<16x16x128xf32>
    %35 = vector.extract_strided_slice %28 {offsets = [1, 0], sizes = [1, 128], strides = [1, 1]} : vector<9x128xf32> to vector<1x128xf32>
    %36 = vector.shape_cast %35 : vector<1x128xf32> to vector<1x1x128xf32>
    %37 = vector.broadcast %36 : vector<1x1x128xf32> to vector<16x16x128xf32>
    %38 = arith.mulf %34, %37 : vector<16x16x128xf32>
    %39 = arith.addf %33, %38 : vector<16x16x128xf32>
    %40 = vector.extract_strided_slice %27 {offsets = [0, 2, 0], sizes = [16, 16, 128], strides = [1, 1, 1]} : vector<18x24x128xf32> to vector<16x16x128xf32>
    %41 = vector.extract_strided_slice %28 {offsets = [2, 0], sizes = [1, 128], strides = [1, 1]} : vector<9x128xf32> to vector<1x128xf32>
    %42 = vector.shape_cast %41 : vector<1x128xf32> to vector<1x1x128xf32>
    %43 = vector.broadcast %42 : vector<1x1x128xf32> to vector<16x16x128xf32>
    %44 = arith.mulf %40, %43 : vector<16x16x128xf32>
    %45 = arith.addf %39, %44 : vector<16x16x128xf32>
    %46 = vector.extract_strided_slice %27 {offsets = [1, 0, 0], sizes = [16, 16, 128], strides = [1, 1, 1]} : vector<18x24x128xf32> to vector<16x16x128xf32>
    %47 = vector.extract_strided_slice %28 {offsets = [3, 0], sizes = [1, 128], strides = [1, 1]} : vector<9x128xf32> to vector<1x128xf32>
    %48 = vector.shape_cast %47 : vector<1x128xf32> to vector<1x1x128xf32>
    %49 = vector.broadcast %48 : vector<1x1x128xf32> to vector<16x16x128xf32>
    %50 = arith.mulf %46, %49 : vector<16x16x128xf32>
    %51 = arith.addf %45, %50 : vector<16x16x128xf32>
    %52 = vector.extract_strided_slice %27 {offsets = [1, 1, 0], sizes = [16, 16, 128], strides = [1, 1, 1]} : vector<18x24x128xf32> to vector<16x16x128xf32>
    %53 = vector.extract_strided_slice %28 {offsets = [4, 0], sizes = [1, 128], strides = [1, 1]} : vector<9x128xf32> to vector<1x128xf32>
    %54 = vector.shape_cast %53 : vector<1x128xf32> to vector<1x1x128xf32>
    %55 = vector.broadcast %54 : vector<1x1x128xf32> to vector<16x16x128xf32>
    %56 = arith.mulf %52, %55 : vector<16x16x128xf32>
    %57 = arith.addf %51, %56 : vector<16x16x128xf32>
    %58 = vector.extract_strided_slice %27 {offsets = [1, 2, 0], sizes = [16, 16, 128], strides = [1, 1, 1]} : vector<18x24x128xf32> to vector<16x16x128xf32>
    %59 = vector.extract_strided_slice %28 {offsets = [5, 0], sizes = [1, 128], strides = [1, 1]} : vector<9x128xf32> to vector<1x128xf32>
    %60 = vector.shape_cast %59 : vector<1x128xf32> to vector<1x1x128xf32>
    %61 = vector.broadcast %60 : vector<1x1x128xf32> to vector<16x16x128xf32>
    %62 = arith.mulf %58, %61 : vector<16x16x128xf32>
    %63 = arith.addf %57, %62 : vector<16x16x128xf32>
    %64 = vector.extract_strided_slice %27 {offsets = [2, 0, 0], sizes = [16, 16, 128], strides = [1, 1, 1]} : vector<18x24x128xf32> to vector<16x16x128xf32>
    %65 = vector.extract_strided_slice %28 {offsets = [6, 0], sizes = [1, 128], strides = [1, 1]} : vector<9x128xf32> to vector<1x128xf32>
    %66 = vector.shape_cast %65 : vector<1x128xf32> to vector<1x1x128xf32>
    %67 = vector.broadcast %66 : vector<1x1x128xf32> to vector<16x16x128xf32>
    %68 = arith.mulf %64, %67 : vector<16x16x128xf32>
    %69 = arith.addf %63, %68 : vector<16x16x128xf32>
    %70 = vector.extract_strided_slice %27 {offsets = [2, 1, 0], sizes = [16, 16, 128], strides = [1, 1, 1]} : vector<18x24x128xf32> to vector<16x16x128xf32>
    %71 = vector.extract_strided_slice %28 {offsets = [7, 0], sizes = [1, 128], strides = [1, 1]} : vector<9x128xf32> to vector<1x128xf32>
    %72 = vector.shape_cast %71 : vector<1x128xf32> to vector<1x1x128xf32>
    %73 = vector.broadcast %72 : vector<1x1x128xf32> to vector<16x16x128xf32>
    %74 = arith.mulf %70, %73 : vector<16x16x128xf32>
    %75 = arith.addf %69, %74 : vector<16x16x128xf32>
    %76 = vector.extract_strided_slice %27 {offsets = [2, 2, 0], sizes = [16, 16, 128], strides = [1, 1, 1]} : vector<18x24x128xf32> to vector<16x16x128xf32>
    %77 = vector.extract_strided_slice %28 {offsets = [8, 0], sizes = [1, 128], strides = [1, 1]} : vector<9x128xf32> to vector<1x128xf32>
    %78 = vector.shape_cast %77 : vector<1x128xf32> to vector<1x1x128xf32>
    %79 = vector.broadcast %78 : vector<1x1x128xf32> to vector<16x16x128xf32>
    %80 = arith.mulf %76, %79 : vector<16x16x128xf32>
    %81 = arith.addf %75, %80 : vector<16x16x128xf32>
    %c0_14 = arith.constant 0 : index
    %c0_15 = arith.constant 0 : index
    %82 = vector.load %arg5[%c0_14, %c0_15] : memref<1x128xf32, #tpu.memory_space<vmem>>, vector<1x128xf32>
    %83 = vector.shape_cast %82 : vector<1x128xf32> to vector<1x1x128xf32>
    %84 = vector.broadcast %83 : vector<1x1x128xf32> to vector<16x16x128xf32>
    %85 = arith.addf %81, %84 : vector<16x16x128xf32>
    %cst_16 = arith.constant 0.000000e+00 : f32
    %cst_17 = arith.constant 6.000000e+00 : f32
    %86 = vector.broadcast %cst_16 : f32 to vector<16x16x128xf32>
    %87 = arith.maximumf %86, %85 : vector<16x16x128xf32>
    %88 = vector.broadcast %cst_17 : f32 to vector<16x16x128xf32>
    %89 = arith.minimumf %88, %87 : vector<16x16x128xf32>
    %90 = vector.shape_cast %89 : vector<16x16x128xf32> to vector<256x128xf32>
    %c0_18 = arith.constant 0 : index
    %c0_19 = arith.constant 0 : index
    %91 = vector.load %arg6[%c0_18, %c0_19] : memref<128x128xf32, #tpu.memory_space<vmem>>, vector<128x128xf32>
    %cst_20 = arith.constant dense<0.000000e+00> : vector<256x128xf32>
    %92 = tpu.matmul %90, %91, %cst_20 {dimension_numbers = #tpu.dot_dimension_numbers<[1], [0], [0], [1], [0, 0, 1, 1], [], []>} : vector<256x128xf32>, vector<128x128xf32>, vector<256x128xf32> -> vector<256x128xf32>
    %c0_21 = arith.constant 0 : index
    %c0_22 = arith.constant 0 : index
    %93 = vector.load %arg7[%c0_21, %c0_22] : memref<1x128xf32, #tpu.memory_space<vmem>>, vector<1x128xf32>
    %94 = vector.broadcast %93 : vector<1x128xf32> to vector<256x128xf32>
    %95 = arith.addf %92, %94 : vector<256x128xf32>
    %96 = vector.extract_strided_slice %1 {offsets = [1, 1, 0], sizes = [16, 16, 128], strides = [1, 1, 1]} : vector<18x24x128xf32> to vector<16x16x128xf32>
    %97 = vector.shape_cast %96 : vector<16x16x128xf32> to vector<256x128xf32>
    %98 = arith.addf %95, %97 : vector<256x128xf32>
    %c0_23 = arith.constant 0 : index
    %c0_24 = arith.constant 0 : index
    %c0_25 = arith.constant 0 : index
    %99 = vector.load %arg8[%c0_23, %c0_24, %c0_25] : memref<1x256x128xf32, #tpu.memory_space<vmem>>, vector<1x256x128xf32>
    %100 = vector.shape_cast %99 : vector<1x256x128xf32> to vector<256x128xf32>
    %101 = vector.shape_cast %98 : vector<256x128xf32> to vector<1x256x128xf32>
    tpu.vector_store %arg8[%c0_23, %c0_24, %c0_25], %101 {strides = array<i32>} : memref<1x256x128xf32, #tpu.memory_space<vmem>>, vector<1x256x128xf32>,
    return
  }
  func.func @transform_0(%arg0: i32) -> (i32, i32, i32, i32) {
    %c0_i32 = arith.constant 0 : i32
    %c0_i32_0 = arith.constant 0 : i32
    %c0_i32_1 = arith.constant 0 : i32
    %c0_i32_2 = arith.constant 0 : i32
    return %arg0, %c0_i32, %c0_i32_0, %c0_i32_1 : i32, i32, i32, i32
  }
  func.func @transform_1(%arg0: i32) -> (i32, i32) {
    %c0_i32 = arith.constant 0 : i32
    %c0_i32_0 = arith.constant 0 : i32
    %c0_i32_1 = arith.constant 0 : i32
    return %c0_i32, %c0_i32_0 : i32, i32
  }
  func.func @transform_2(%arg0: i32) -> (i32, i32) {
    %c0_i32 = arith.constant 0 : i32
    %c0_i32_0 = arith.constant 0 : i32
    %c0_i32_1 = arith.constant 0 : i32
    return %c0_i32, %c0_i32_0 : i32, i32
  }
  func.func @transform_3(%arg0: i32) -> (i32, i32) {
    %c0_i32 = arith.constant 0 : i32
    %c0_i32_0 = arith.constant 0 : i32
    %c0_i32_1 = arith.constant 0 : i32
    return %c0_i32, %c0_i32_0 : i32, i32
  }
  func.func @transform_4(%arg0: i32) -> (i32, i32) {
    %c0_i32 = arith.constant 0 : i32
    %c0_i32_0 = arith.constant 0 : i32
    %c0_i32_1 = arith.constant 0 : i32
    return %c0_i32, %c0_i32_0 : i32, i32
  }
  func.func @transform_5(%arg0: i32) -> (i32, i32) {
    %c0_i32 = arith.constant 0 : i32
    %c0_i32_0 = arith.constant 0 : i32
    %c0_i32_1 = arith.constant 0 : i32
    return %c0_i32, %c0_i32_0 : i32, i32
  }
  func.func @transform_6(%arg0: i32) -> (i32, i32) {
    %c0_i32 = arith.constant 0 : i32
    %c0_i32_0 = arith.constant 0 : i32
    %c0_i32_1 = arith.constant 0 : i32
    return %c0_i32, %c0_i32_0 : i32, i32
  }
  func.func @transform_7(%arg0: i32) -> (i32, i32, i32) {
    %c0_i32 = arith.constant 0 : i32
    %c0_i32_0 = arith.constant 0 : i32
    %c0_i32_1 = arith.constant 0 : i32
    return %arg0, %c0_i32, %c0_i32_0 : i32, i32, i32
  }
}

</mosaic_0001>

<llo_original>
// kernel: tpu_custom_call.1
$region0: #{tpu_custom_call.1}
  #allocation0 [shape = 'u32[]', space=smem, size = 0x4, offset = 0x4, fixed_abs, tag = 'smem constant byte address 0x4 - core index']
  #allocation1 [shape = 'u32[144,128]{1,0:T(1,128)}', space=vmem, size = 0x12000, scoped, tag = 'internal scratch']
  %s0 = inlined_call_operand.hbm [shape: f32[2,18,24,128], index: 0, kind: input, shape index: {}]
  %s1 = inlined_call_operand.hbm [shape: f32[128,128], index: 1, kind: input, shape index: {}]
  %s2 = inlined_call_operand.vmem [shape: f32[1,128], index: 2, kind: input, shape index: {}]
  %s3 = inlined_call_operand.hbm [shape: f32[9,128], index: 3, kind: input, shape index: {}]
  %s4 = inlined_call_operand.vmem [shape: f32[1,128], index: 4, kind: input, shape index: {}]
  %s5 = inlined_call_operand.hbm [shape: f32[128,128], index: 5, kind: input, shape index: {}]
  %s6 = inlined_call_operand.vmem [shape: f32[1,128], index: 6, kind: input, shape index: {}]
  %s7 = inlined_call_operand.hbm [shape: f32[2,256,128], index: 7, kind: output, shape index: {}]
  %s8 = sld [smem:[#allocation0]]
  $region77: #{tpu_custom_call.1} parent=0
    _
  %s10 = ssub.s32 1, %s8
  %s11 = scalar_select 0, %s10, %s8
  $region1: #{tpu_custom_call.1} parent=0
    #allocation2 [shape = 'u8[442368]{0}', space=vmem, size = 0x6c000, scoped, tag = 'input window, operand 0']
    #allocation3 [shape = 's32[2]{0}', space=sflag, size = 0x8, scoped, tag = 'scoped memory for tpu_custom_call.1']
    #allocation4 [shape = 's32[2]{0}', space=sflag, size = 0x8, scoped, tag = 'scoped memory for tpu_custom_call.1']
    #allocation5 [shape = 'u8[65536]{0}', space=vmem, size = 0x10000, scoped, tag = 'input window, operand 1, single buffered']
    #allocation6 [shape = 's32[1]{0}', space=sflag, size = 0x4, scoped, tag = 'scoped memory for tpu_custom_call.1']
    #allocation7 [shape = 'u8[8192]{0}', space=vmem, size = 0x2000, scoped, tag = 'input window, operand 3, single buffered']
    #allocation8 [shape = 'u8[65536]{0}', space=vmem, size = 0x10000, scoped, tag = 'input window, operand 5, single buffered']
    #allocation9 [shape = 's32[1]{0}', space=sflag, size = 0x4, scoped, tag = 'scoped memory for tpu_custom_call.1']
    #allocation10 [shape = 'u8[262144]{0}', space=vmem, size = 0x40000, scoped, tag = 'output window, operand 0']
    %12 = vsyncpa [#allocation3], 0
    %s13 = scalar_lea.sflag [#allocation3], 1
    %14 = vsyncpa %s13, 0
    %15 = vsyncpa [#allocation6], 0
    %16 = vsyncpa [#allocation9], 0
    %17 = vsyncpa [#allocation4], 0
    %s18 = scalar_lea.sflag [#allocation4], 1
    %19 = vsyncpa %s18, 0
    loop: start=0, step=1, limit=4
    $region2: #{tpu_custom_call.1} parent=1 // loop_pre_header
      _
    $region3: #{tpu_custom_call.1} parent=1 // loop_header
      %s21 = sphi 0, %s25
      %p22 = scmp.ge.s32.totalorder %s21, 4
      %s31 = sphi 0, %s33
      %s34 = sphi 0, %s31
      %s35 = sphi 0, %s34
      %s51 = sphi 0, %s35
      %s55 = sphi 0, %s55
      %s57 = sphi 0, %s55
      %s58 = sphi 0, %s57
      %s72 = sphi 0, %s58
      %s76 = sphi 0, %s76
      %s78 = sphi 0, %s76
      %s79 = sphi 0, %s78
      %s93 = sphi 0, %s79
      %s97 = sphi 0, %s97
      %s99 = sphi 0, %s97
      %s100 = sphi 0, %s99
      %s114 = sphi 0, %s100
      %s118 = sphi 0, %s118
      %s120 = sphi 0, %s118
      %s121 = sphi 0, %s120
      %s135 = sphi 0, %s121
      %s139 = sphi 0, %s139
      %s141 = sphi 0, %s139
      %s142 = sphi 0, %s141
      %s156 = sphi 0, %s142
      %s160 = sphi 0, %s160
      %s162 = sphi 0, %s160
      %s163 = sphi 0, %s162
      %s177 = sphi 0, %s163
      %s183 = sphi 0, %s185
      %s186 = sphi 0, %s183
      %s187 = sphi 0, %s186
      %s203 = sphi 0, %s187
    $region4: #{tpu_custom_call.1} parent=1 // loop_header_branch
      %24 = sbr.rel (%p22) target = $region8
    $region5: #{tpu_custom_call.1} parent=1 // loop_body
      %s26 = ssub.s32 %s21, 1
      %s27 = ssub.s32 %s21, 2
      %s28 = sadd.s32 %s21, 1
      %s29 = ssub.s32 %s21, %s28
      %p30 = scmp.eq.s32.totalorder %s29, 0
      %s32 = sadd.s32 %s31, 1
      %s33 = scalar_select %p30, %s31, %s32
      %p36 = pneg %p30
      %p37 = scmp.eq.s32.totalorder %s21, 1
      %p38 = por %p36, %p37
      %p39 = scmp.ne.s32.totalorder %s31, %s34
      %p40 = scmp.eq.s32.totalorder %s21, 0
      %p41 = por %p39, %p40
      %p42 = scmp.ne.s32.totalorder %s31, %s34
      %p43 = scmp.eq.s32.totalorder %s26, 1
      %p44 = por %p42, %p43
      %p45 = scmp.ne.s32.totalorder %s34, %s35
      %p46 = scmp.eq.s32.totalorder %s26, 0
      %p47 = por %p45, %p46
      %p48 = scmp.ne.s32.totalorder %s34, %s35
      %p49 = scmp.eq.s32.totalorder %s27, 1
      %p50 = por %p48, %p49
      %p52 = scmp.ne.s32.totalorder %s35, %s51
      %p53 = scmp.eq.s32.totalorder %s27, 0
      %p54 = por %p52, %p53
      %s56 = sadd.s32 %s55, 1
      %p59 = scmp.eq.s32.totalorder %s21, 1
      %p60 = scmp.ne.s32.totalorder %s55, %s57
      %p61 = scmp.eq.s32.totalorder %s21, 0
      %p62 = por %p60, %p61
      %p63 = scmp.ne.s32.totalorder %s55, %s57
      %p64 = scmp.eq.s32.totalorder %s26, 1
      %p65 = por %p63, %p64
      %p66 = scmp.ne.s32.totalorder %s57, %s58
      %p67 = scmp.eq.s32.totalorder %s26, 0
      %p68 = por %p66, %p67
      %p69 = scmp.ne.s32.totalorder %s57, %s58
      %p70 = scmp.eq.s32.totalorder %s27, 1
      %p71 = por %p69, %p70
      %p73 = scmp.ne.s32.totalorder %s58, %s72
      %p74 = scmp.eq.s32.totalorder %s27, 0
      %p75 = por %p73, %p74
      %s77 = sadd.s32 %s76, 1
      %p80 = scmp.eq.s32.totalorder %s21, 1
      %p81 = scmp.ne.s32.totalorder %s76, %s78
      %p82 = scmp.eq.s32.totalorder %s21, 0
      %p83 = por %p81, %p82
      %p84 = scmp.ne.s32.totalorder %s76, %s78
      %p85 = scmp.eq.s32.totalorder %s26, 1
      %p86 = por %p84, %p85
      %p87 = scmp.ne.s32.totalorder %s78, %s79
      %p88 = scmp.eq.s32.totalorder %s26, 0
      %p89 = por %p87, %p88
      %p90 = scmp.ne.s32.totalorder %s78, %s79
      %p91 = scmp.eq.s32.totalorder %s27, 1
      %p92 = por %p90, %p91
      %p94 = scmp.ne.s32.totalorder %s79, %s93
      %p95 = scmp.eq.s32.totalorder %s27, 0
      %p96 = por %p94, %p95
      %s98 = sadd.s32 %s97, 1
      %p101 = scmp.eq.s32.totalorder %s21, 1
      %p102 = scmp.ne.s32.totalorder %s97, %s99
      %p103 = scmp.eq.s32.totalorder %s21, 0
      %p104 = por %p102, %p103
      %p105 = scmp.ne.s32.totalorder %s97, %s99
      %p106 = scmp.eq.s32.totalorder %s26, 1
      %p107 = por %p105, %p106
      %p108 = scmp.ne.s32.totalorder %s99, %s100
      %p109 = scmp.eq.s32.totalorder %s26, 0
      %p110 = por %p108, %p109
      %p111 = scmp.ne.s32.totalorder %s99, %s100
      %p112 = scmp.eq.s32.totalorder %s27, 1
      %p113 = por %p111, %p112
      %p115 = scmp.ne.s32.totalorder %s100, %s114
      %p116 = scmp.eq.s32.totalorder %s27, 0
      %p117 = por %p115, %p116
      %s119 = sadd.s32 %s118, 1
      %p122 = scmp.eq.s32.totalorder %s21, 1
      %p123 = scmp.ne.s32.totalorder %s118, %s120
      %p124 = scmp.eq.s32.totalorder %s21, 0
      %p125 = por %p123, %p124
      %p126 = scmp.ne.s32.totalorder %s118, %s120
      %p127 = scmp.eq.s32.totalorder %s26, 1
      %p128 = por %p126, %p127
      %p129 = scmp.ne.s32.totalorder %s120, %s121
      %p130 = scmp.eq.s32.totalorder %s26, 0
      %p131 = por %p129, %p130
      %p132 = scmp.ne.s32.totalorder %s120, %s121
      %p133 = scmp.eq.s32.totalorder %s27, 1
      %p134 = por %p132, %p133
      %p136 = scmp.ne.s32.totalorder %s121, %s135
      %p137 = scmp.eq.s32.totalorder %s27, 0
      %p138 = por %p136, %p137
      %s140 = sadd.s32 %s139, 1
      %p143 = scmp.eq.s32.totalorder %s21, 1
      %p144 = scmp.ne.s32.totalorder %s139, %s141
      %p145 = scmp.eq.s32.totalorder %s21, 0
      %p146 = por %p144, %p145
      %p147 = scmp.ne.s32.totalorder %s139, %s141
      %p148 = scmp.eq.s32.totalorder %s26, 1
      %p149 = por %p147, %p148
      %p150 = scmp.ne.s32.totalorder %s141, %s142
      %p151 = scmp.eq.s32.totalorder %s26, 0
      %p152 = por %p150, %p151
      %p153 = scmp.ne.s32.totalorder %s141, %s142
      %p154 = scmp.eq.s32.totalorder %s27, 1
      %p155 = por %p153, %p154
      %p157 = scmp.ne.s32.totalorder %s142, %s156
      %p158 = scmp.eq.s32.totalorder %s27, 0
      %p159 = por %p157, %p158
      %s161 = sadd.s32 %s160, 1
      %p164 = scmp.eq.s32.totalorder %s21, 1
      %p165 = scmp.ne.s32.totalorder %s160, %s162
      %p166 = scmp.eq.s32.totalorder %s21, 0
      %p167 = por %p165, %p166
      %p168 = scmp.ne.s32.totalorder %s160, %s162
      %p169 = scmp.eq.s32.totalorder %s26, 1
      %p170 = por %p168, %p169
      %p171 = scmp.ne.s32.totalorder %s162, %s163
      %p172 = scmp.eq.s32.totalorder %s26, 0
      %p173 = por %p171, %p172
      %p174 = scmp.ne.s32.totalorder %s162, %s163
      %p175 = scmp.eq.s32.totalorder %s27, 1
      %p176 = por %p174, %p175
      %p178 = scmp.ne.s32.totalorder %s163, %s177
      %p179 = scmp.eq.s32.totalorder %s27, 0
      %p180 = por %p178, %p179
      %s181 = ssub.s32 %s21, %s28
      %p182 = scmp.eq.s32.totalorder %s181, 0
      %s184 = sadd.s32 %s183, 1
      %s185 = scalar_select %p182, %s183, %s184
      %p188 = pneg %p182
      %p189 = scmp.eq.s32.totalorder %s21, 1
      %p190 = por %p188, %p189
      %p191 = scmp.ne.s32.totalorder %s183, %s186
      %p192 = scmp.eq.s32.totalorder %s21, 0
      %p193 = por %p191, %p192
      %p194 = scmp.ne.s32.totalorder %s183, %s186
      %p195 = scmp.eq.s32.totalorder %s26, 1
      %p196 = por %p194, %p195
      %p197 = scmp.ne.s32.totalorder %s186, %s187
      %p198 = scmp.eq.s32.totalorder %s26, 0
      %p199 = por %p197, %p198
      %p200 = scmp.ne.s32.totalorder %s186, %s187
      %p201 = scmp.eq.s32.totalorder %s27, 1
      %p202 = por %p200, %p201
      %p204 = scmp.ne.s32.totalorder %s187, %s203
      %p205 = scmp.eq.s32.totalorder %s27, 0
      %p206 = por %p204, %p205
      %p207 = scmp.le.s32.totalorder 1, %s21
      %p208 = scmp.lt.s32.totalorder %s21, 3
      %p209 = pnand %p207, %p208
      %p210 = pneg %p209
      // Predicated region
      $region9: #{tpu_custom_call.1} parent=5 // pred_check
        _
      $region10: #{tpu_custom_call.1} parent=5 // pred_check_branch
        %212 = sbr.rel (%p209) target = $region12
      $region11: #{tpu_custom_call.1} parent=5 // pred_region
        %s213 = ssub.s32 %s21, 1
        // Predicated region
        $region13: #{tpu_custom_call.1} parent=11 // pred_check
          %p214 = pneg %p68
        $region14: #{tpu_custom_call.1} parent=11 // pred_check_branch
          %216 = sbr.rel (%p214) target = $region16
        $region15: #{tpu_custom_call.1} parent=11 // pred_region
          %s218 = ssub.s32 2048, 2048
          %219 = vsyncadd [#allocation6], %s218
          %s220 = sshll.u32 [#allocation5], 4
          %s221 = int_to_ptr.vmem [resolvable:$true] %s220
          %226 = dma.hbm_to_vmem [thread:$0]  %s1, 2048, %s221, [#allocation6], 128, 128, 8
        $region16: #{tpu_custom_call.1} parent=11 // pred_fallthru
          _
        // Predicated region
        $region17: #{tpu_custom_call.1} parent=11 // pred_check
          %p227 = pneg %p89
        $region18: #{tpu_custom_call.1} parent=11 // pred_check_branch
          %229 = sbr.rel (%p227) target = $region20
        $region19: #{tpu_custom_call.1} parent=11 // pred_region
          _
        $region20: #{tpu_custom_call.1} parent=11 // pred_fallthru
          _
        // Predicated region
        $region21: #{tpu_custom_call.1} parent=11 // pred_check
          %p230 = pneg %p110
        $region22: #{tpu_custom_call.1} parent=11 // pred_check_branch
          %232 = sbr.rel (%p230) target = $region24
        $region23: #{tpu_custom_call.1} parent=11 // pred_region
          %s234 = ssub.s32 256, 256
          %235 = vsyncadd [#allocation6], %s234
          %s236 = sshll.u32 [#allocation7], 4
          %s237 = int_to_ptr.vmem [resolvable:$true] %s236
          %242 = dma.hbm_to_vmem [thread:$0]  %s3, 256, %s237, [#allocation6], 128, 128, 8
        $region24: #{tpu_custom_call.1} parent=11 // pred_fallthru
          _
        // Predicated region
        $region25: #{tpu_custom_call.1} parent=11 // pred_check
          %p243 = pneg %p131
        $region26: #{tpu_custom_call.1} parent=11 // pred_check_branch
          %245 = sbr.rel (%p243) target = $region28
        $region27: #{tpu_custom_call.1} parent=11 // pred_region
          _
        $region28: #{tpu_custom_call.1} parent=11 // pred_fallthru
          _
        // Predicated region
        $region29: #{tpu_custom_call.1} parent=11 // pred_check
          %p246 = pneg %p152
        $region30: #{tpu_custom_call.1} parent=11 // pred_check_branch
          %248 = sbr.rel (%p246) target = $region32
        $region31: #{tpu_custom_call.1} parent=11 // pred_region
          %s250 = ssub.s32 2048, 2048
          %251 = vsyncadd [#allocation9], %s250
          %s252 = sshll.u32 [#allocation8], 4
          %s253 = int_to_ptr.vmem [resolvable:$true] %s252
          %258 = dma.hbm_to_vmem [thread:$0]  %s5, 2048, %s253, [#allocation9], 128, 128, 8
        $region32: #{tpu_custom_call.1} parent=11 // pred_fallthru
          _
        // Predicated region
        $region33: #{tpu_custom_call.1} parent=11 // pred_check
          %p259 = pneg %p173
        $region34: #{tpu_custom_call.1} parent=11 // pred_check_branch
          %261 = sbr.rel (%p259) target = $region36
        $region35: #{tpu_custom_call.1} parent=11 // pred_region
          _
        $region36: #{tpu_custom_call.1} parent=11 // pred_fallthru
          _
      $region12: #{tpu_custom_call.1} parent=5 // pred_fallthru
        _
      %p262 = scmp.lt.s32.totalorder %s21, 2
      // Predicated region
      $region37: #{tpu_custom_call.1} parent=5 // pred_check
        %p263 = pneg %p262
      $region38: #{tpu_custom_call.1} parent=5 // pred_check_branch
        %265 = sbr.rel (%p263) target = $region40
      $region39: #{tpu_custom_call.1} parent=5 // pred_region
        // Predicated region
        $region41: #{tpu_custom_call.1} parent=39 // pred_check
          %p266 = pneg %p41
        $region42: #{tpu_custom_call.1} parent=39 // pred_check_branch
          %268 = sbr.rel (%p266) target = $region44
        $region43: #{tpu_custom_call.1} parent=39 // pred_region
          %s269 = sand.u32 %s31, 1
          %s270 = scalar_lea.sflag [#allocation3], %s269
          %s271 = sand.u32 %s31, 1
          %s272 = smul.addr %s271, 432
          %s273 = scalar_lea.vmem [#allocation2], %s272
          %s275 = ssub.s32 6912, 6912
          %276 = vsyncadd %s270, %s275
          %s277 = smul.addr %s21, 54
          %s278 = smul.addr %s277, 128
          %s279 = scalar_lea.hbm %s0, %s278
          %s280 = sshll.u32 %s273, 4
          %s281 = int_to_ptr.vmem [resolvable:$true] %s280
          %286 = dma.hbm_to_vmem [thread:$0]  %s279, 6912, %s281, %s270, 128, 128, 8
        $region44: #{tpu_custom_call.1} parent=39 // pred_fallthru
          _
      $region40: #{tpu_custom_call.1} parent=5 // pred_fallthru
        _
      %p287 = scmp.le.s32.totalorder 1, %s21
      %p288 = scmp.lt.s32.totalorder %s21, 3
      %p289 = pnand %p287, %p288
      %p290 = pneg %p289
      // Predicated region
      $region45: #{tpu_custom_call.1} parent=5 // pred_check
        _
      $region46: #{tpu_custom_call.1} parent=5 // pred_check_branch
        %292 = sbr.rel (%p289) target = $region48
      $region47: #{tpu_custom_call.1} parent=5 // pred_region
        %s293 = ssub.s32 %s21, 1
        %s294 = sand.u32 %s34, 1
        %s295 = scalar_lea.sflag [#allocation3], %s294
        %s296 = sand.u32 %s34, 1
        %s297 = smul.addr %s296, 432
        %s298 = scalar_lea.vmem [#allocation2], %s297
        // Predicated region
        $region49: #{tpu_custom_call.1} parent=47 // pred_check
          %p299 = pneg %p47
        $region50: #{tpu_custom_call.1} parent=47 // pred_check_branch
          %301 = sbr.rel (%p299) target = $region52
        $region51: #{tpu_custom_call.1} parent=47 // pred_region
          %302 = dma.done %s295, 6912
        $region52: #{tpu_custom_call.1} parent=47 // pred_fallthru
          _
        // Predicated region
        $region53: #{tpu_custom_call.1} parent=47 // pred_check
          %p303 = pneg %p68
        $region54: #{tpu_custom_call.1} parent=47 // pred_check_branch
          %305 = sbr.rel (%p303) target = $region56
        $region55: #{tpu_custom_call.1} parent=47 // pred_region
          %306 = dma.done [#allocation6], 2048
        $region56: #{tpu_custom_call.1} parent=47 // pred_fallthru
          _
        // Predicated region
        $region57: #{tpu_custom_call.1} parent=47 // pred_check
          %p307 = pneg %p110
        $region58: #{tpu_custom_call.1} parent=47 // pred_check_branch
          %309 = sbr.rel (%p307) target = $region60
        $region59: #{tpu_custom_call.1} parent=47 // pred_region
          %310 = dma.done [#allocation6], 256
        $region60: #{tpu_custom_call.1} parent=47 // pred_fallthru
          _
        // Predicated region
        $region61: #{tpu_custom_call.1} parent=47 // pred_check
          %p311 = pneg %p152
        $region62: #{tpu_custom_call.1} parent=47 // pred_check_branch
          %313 = sbr.rel (%p311) target = $region64
        $region63: #{tpu_custom_call.1} parent=47 // pred_region
          %314 = dma.done [#allocation9], 2048
        $region64: #{tpu_custom_call.1} parent=47 // pred_fallthru
          _
        %s315 = sand.u32 %s34, 1
        %s316 = scalar_lea.sflag [#allocation3], %s315
        %s317 = sand.u32 %s34, 1
        %s318 = smul.addr %s317, 432
        %s319 = scalar_lea.vmem [#allocation2], %s318
        %p320 = pneg %p47
        %p321 = pneg %p44
        %p322 = pneg %p68
        %p323 = pneg %p65
        %p324 = pneg %p89
        %p325 = pneg %p86
        %p326 = pneg %p110
        %p327 = pneg %p107
        %p328 = pneg %p131
        %p329 = pneg %p128
        %p330 = pneg %p152
        %p331 = pneg %p149
        %p332 = pneg %p173
        %p333 = pneg %p170
        %p334 = pneg %p199
        %p335 = pneg %p196
        %s336 = sand.u32 %s186, 1
        %s337 = scalar_lea.sflag [#allocation4], %s336
        %s338 = sand.u32 %s186, 1
        %s339 = smul.addr %s338, 256
        %s340 = scalar_lea.vmem [#allocation10], %s339
        %v341 = vld [vmem:[%s298] sm:$0xff]
        %v342 = vld [vmem:[%s298 + $0x8] sm:$0xff]
        %v343 = vld [vmem:[%s298 + $0x10] sm:$0xff]
        %v344 = vld [vmem:[%s298 + $0x18] sm:$0xff]
        %v345 = vld [vmem:[%s298 + $0x20] sm:$0xff]
        %v346 = vld [vmem:[%s298 + $0x28] sm:$0xff]
        %v347 = vld [vmem:[%s298 + $0x30] sm:$0xff]
        %v348 = vld [vmem:[%s298 + $0x38] sm:$0xff]
        %v349 = vld [vmem:[%s298 + $0x40] sm:$0xff]
        %v350 = vld [vmem:[%s298 + $0x48] sm:$0xff]
        %v351 = vld [vmem:[%s298 + $0x50] sm:$0xff]
        %v352 = vld [vmem:[%s298 + $0x58] sm:$0xff]
        %v353 = vld [vmem:[%s298 + $0x60] sm:$0xff]
        %v354 = vld [vmem:[%s298 + $0x68] sm:$0xff]
        %v355 = vld [vmem:[%s298 + $0x70] sm:$0xff]
        %v356 = vld [vmem:[%s298 + $0x78] sm:$0xff]
        %v357 = vld [vmem:[%s298 + $0x80] sm:$0xff]
        %v358 = vld [vmem:[%s298 + $0x88] sm:$0xff]
        %v359 = vld [vmem:[%s298 + $0x90] sm:$0xff]
        %v360 = vld [vmem:[%s298 + $0x98] sm:$0xff]
        %v361 = vld [vmem:[%s298 + $0xa0] sm:$0xff]
        %v362 = vld [vmem:[%s298 + $0xa8] sm:$0xff]
        %v363 = vld [vmem:[%s298 + $0xb0] sm:$0xff]
        %v364 = vld [vmem:[%s298 + $0xb8] sm:$0xff]
        %v365 = vld [vmem:[%s298 + $0xc0] sm:$0xff]
        %v366 = vld [vmem:[%s298 + $0xc8] sm:$0xff]
        %v367 = vld [vmem:[%s298 + $0xd0] sm:$0xff]
        %v368 = vld [vmem:[%s298 + $0xd8] sm:$0xff]
        %v369 = vld [vmem:[%s298 + $0xe0] sm:$0xff]
        %v370 = vld [vmem:[%s298 + $0xe8] sm:$0xff]
        %v371 = vld [vmem:[%s298 + $0xf0] sm:$0xff]
        %v372 = vld [vmem:[%s298 + $0xf8] sm:$0xff]
        %v373 = vld [vmem:[%s298 + $0x100] sm:$0xff]
        %v374 = vld [vmem:[%s298 + $0x108] sm:$0xff]
        %v375 = vld [vmem:[%s298 + $0x110] sm:$0xff]
        %v376 = vld [vmem:[%s298 + $0x118] sm:$0xff]
        %v377 = vld [vmem:[%s298 + $0x120] sm:$0xff]
        %v378 = vld [vmem:[%s298 + $0x128] sm:$0xff]
        %v379 = vld [vmem:[%s298 + $0x130] sm:$0xff]
        %v380 = vld [vmem:[%s298 + $0x138] sm:$0xff]
        %v381 = vld [vmem:[%s298 + $0x140] sm:$0xff]
        %v382 = vld [vmem:[%s298 + $0x148] sm:$0xff]
        %v383 = vld [vmem:[%s298 + $0x150] sm:$0xff]
        %v384 = vld [vmem:[%s298 + $0x158] sm:$0xff]
        %v385 = vld [vmem:[%s298 + $0x160] sm:$0xff]
        %v386 = vld [vmem:[%s298 + $0x168] sm:$0xff]
        %v387 = vld [vmem:[%s298 + $0x170] sm:$0xff]
        %v388 = vld [vmem:[%s298 + $0x178] sm:$0xff]
        %v389 = vld [vmem:[%s298 + $0x180] sm:$0xff]
        %v390 = vld [vmem:[%s298 + $0x188] sm:$0xff]
        %v391 = vld [vmem:[%s298 + $0x190] sm:$0xff]
        %v392 = vld [vmem:[%s298 + $0x198] sm:$0xff]
        %v393 = vld [vmem:[%s298 + $0x1a0] sm:$0xff]
        %v394 = vld [vmem:[%s298 + $0x1a8] sm:$0xff]
        %v395 = vld [vmem:[#allocation5] sm:$0xff]
        %v396 = vld [vmem:[#allocation5 + $0x8] sm:$0xff]
        %v397 = vld [vmem:[#allocation5 + $0x10] sm:$0xff]
        %v398 = vld [vmem:[#allocation5 + $0x18] sm:$0xff]
        %v399 = vld [vmem:[#allocation5 + $0x20] sm:$0xff]
        %v400 = vld [vmem:[#allocation5 + $0x28] sm:$0xff]
        %v401 = vld [vmem:[#allocation5 + $0x30] sm:$0xff]
        %v402 = vld [vmem:[#allocation5 + $0x38] sm:$0xff]
        %v403 = vld [vmem:[#allocation5 + $0x40] sm:$0xff]
        %v404 = vld [vmem:[#allocation5 + $0x48] sm:$0xff]
        %v405 = vld [vmem:[#allocation5 + $0x50] sm:$0xff]
        %v406 = vld [vmem:[#allocation5 + $0x58] sm:$0xff]
        %v407 = vld [vmem:[#allocation5 + $0x60] sm:$0xff]
        %v408 = vld [vmem:[#allocation5 + $0x68] sm:$0xff]
        %v409 = vld [vmem:[#allocation5 + $0x70] sm:$0xff]
        %v410 = vld [vmem:[#allocation5 + $0x78] sm:$0xff]
        %v411 = vld [vmem:[%s2] sm:$0x1]
        %v413 = vlaneseq
        %v414 = vshrl.u32 %v413, 7
        %v415 = vsub.s32 0, %v414
        %v416 = vrot.slane %v411, %v415
        %418 = vmatprep.subr.mxu0 0.0
        %419 = vmatpush1.msra.mxu0 %v395
        %420 = vmatprep.subr.mxu0 0.0
        %421 = vmatpush1.msra.mxu0 %v396
        %422 = vmatprep.subr.mxu0 0.0
        %423 = vmatpush1.msra.mxu0 %v397
        %424 = vmatprep.subr.mxu0 0.0
        %425 = vmatpush1.msra.mxu0 %v398
        %426 = vmatprep.subr.mxu0 0.0
        %427 = vmatpush1.msra.mxu0 %v399
        %428 = vmatprep.subr.mxu0 0.0
        %429 = vmatpush1.msra.mxu0 %v400
        %430 = vmatprep.subr.mxu0 0.0
        %431 = vmatpush1.msra.mxu0 %v401
        %432 = vmatprep.subr.mxu0 0.0
        %433 = vmatpush1.msra.mxu0 %v402
        %434 = vmatprep.subr.mxu0 0.0
        %435 = vmatpush1.msra.mxu0 %v403
        %436 = vmatprep.subr.mxu0 0.0
        %437 = vmatpush1.msra.mxu0 %v404
        %438 = vmatprep.subr.mxu0 0.0
        %439 = vmatpush1.msra.mxu0 %v405
        %440 = vmatprep.subr.mxu0 0.0
        %441 = vmatpush1.msra.mxu0 %v406
        %442 = vmatprep.subr.mxu0 0.0
        %443 = vmatpush1.msra.mxu0 %v407
        %444 = vmatprep.subr.mxu0 0.0
        %445 = vmatpush1.msra.mxu0 %v408
        %446 = vmatprep.subr.mxu0 0.0
        %447 = vmatpush1.msra.mxu0 %v409
        %448 = vmatprep.subr.mxu0 0.0
        %449 = vmatpush1.msra.mxu0 %v410
        %450 = vmatprep.subr.mxu0 0.0
        %451 = vmatpush1.msra.mxu0 0.0
        %452 = vmatprep.subr.mxu0 0.0
        %453 = vmatpush1.msra.mxu0 0.0
        %454 = vmatprep.subr.mxu0 0.0
        %455 = vmatpush1.msra.mxu0 0.0
        %456 = vmatprep.subr.mxu0 0.0
        %457 = vmatpush1.msra.mxu0 0.0
        %458 = vmatprep.subr.mxu0 0.0
        %459 = vmatpush1.msra.mxu0 0.0
        %460 = vmatprep.subr.mxu0 0.0
        %461 = vmatpush1.msra.mxu0 0.0
        %462 = vmatprep.subr.mxu0 0.0
        %463 = vmatpush1.msra.mxu0 0.0
        %464 = vmatprep.subr.mxu0 0.0
        %465 = vmatpush1.msra.mxu0 0.0
        %466 = vmatprep.subr.mxu0 0.0
        %467 = vmatpush1.msra.mxu0 0.0
        %468 = vmatprep.subr.mxu0 0.0
        %469 = vmatpush1.msra.mxu0 0.0
        %470 = vmatprep.subr.mxu0 0.0
        %471 = vmatpush1.msra.mxu0 0.0
        %472 = vmatprep.subr.mxu0 0.0
        %473 = vmatpush1.msra.mxu0 0.0
        %474 = vmatprep.subr.mxu0 0.0
        %475 = vmatpush1.msra.mxu0 0.0
        %476 = vmatprep.subr.mxu0 0.0
        %477 = vmatpush1.msra.mxu0 0.0
        %478 = vmatprep.subr.mxu0 0.0
        %479 = vmatpush1.msra.mxu0 0.0
        %480 = vmatprep.subr.mxu0 0.0
        %481 = vmatpush1.msra.mxu0 0.0
        %482 = vmatprep.mubr.f32.mxu0 0.0
        %483 = vmatmul.mubr.f32.gmra.mrb[0].mxu0 %v341
        %v484 = vpop.f32.mrb[0].mxu0
        %v485 = vadd.f32 %v416, %v484
        %v486 = vpop.f32.mrb[0].mxu0
        %487 = vmatprep.mubr.f32.mxu0 0.0
        %488 = vmatmul.mubr.f32.gmra.mrb[0].mxu0 %v342
        %v489 = vpop.f32.mrb[0].mxu0
        %v490 = vadd.f32 %v416, %v489
        %v491 = vpop.f32.mrb[0].mxu0
        %492 = vmatprep.mubr.f32.mxu0 0.0
        %493 = vmatmul.mubr.f32.gmra.mrb[0].mxu0 %v343
        %v494 = vpop.f32.mrb[0].mxu0
        %v495 = vadd.f32 %v416, %v494
        %v496 = vpop.f32.mrb[0].mxu0
        %497 = vmatprep.mubr.f32.mxu0 0.0
        %498 = vmatmul.mubr.f32.gmra.mrb[0].mxu0 %v344
        %v499 = vpop.f32.mrb[0].mxu0
        %v500 = vadd.f32 %v416, %v499
        %v501 = vpop.f32.mrb[0].mxu0
        %502 = vmatprep.mubr.f32.mxu0 0.0
        %503 = vmatmul.mubr.f32.gmra.mrb[0].mxu0 %v345
        %v504 = vpop.f32.mrb[0].mxu0
        %v505 = vadd.f32 %v416, %v504
        %v506 = vpop.f32.mrb[0].mxu0
        %507 = vmatprep.mubr.f32.mxu0 0.0
        %508 = vmatmul.mubr.f32.gmra.mrb[0].mxu0 %v346
        %v509 = vpop.f32.mrb[0].mxu0
        %v510 = vadd.f32 %v416, %v509
        %v511 = vpop.f32.mrb[0].mxu0
        %512 = vmatprep.mubr.f32.mxu0 0.0
        %513 = vmatmul.mubr.f32.gmra.mrb[0].mxu0 %v347
        %v514 = vpop.f32.mrb[0].mxu0
        %v515 = vadd.f32 %v416, %v514
        %v516 = vpop.f32.mrb[0].mxu0
        %517 = vmatprep.mubr.f32.mxu0 0.0
        %518 = vmatmul.mubr.f32.gmra.mrb[0].mxu0 %v348
        %v519 = vpop.f32.mrb[0].mxu0
        %v520 = vadd.f32 %v416, %v519
        %v521 = vpop.f32.mrb[0].mxu0
        %522 = vmatprep.mubr.f32.mxu0 0.0
        %523 = vmatmul.mubr.f32.gmra.mrb[0].mxu0 %v349
        %v524 = vpop.f32.mrb[0].mxu0
        %v525 = vadd.f32 %v416, %v524
        %v526 = vpop.f32.mrb[0].mxu0
        %527 = vmatprep.mubr.f32.mxu0 0.0
        %528 = vmatmul.mubr.f32.gmra.mrb[0].mxu0 %v350
        %v529 = vpop.f32.mrb[0].mxu0
        %v530 = vadd.f32 %v416, %v529
        %v531 = vpop.f32.mrb[0].mxu0
        %532 = vmatprep.mubr.f32.mxu0 0.0
        %533 = vmatmul.mubr.f32.gmra.mrb[0].mxu0 %v351
        %v534 = vpop.f32.mrb[0].mxu0
        %v535 = vadd.f32 %v416, %v534
        %v536 = vpop.f32.mrb[0].mxu0
        %537 = vmatprep.mubr.f32.mxu0 0.0
        %538 = vmatmul.mubr.f32.gmra.mrb[0].mxu0 %v352
        %v539 = vpop.f32.mrb[0].mxu0
        %v540 = vadd.f32 %v416, %v539
        %v541 = vpop.f32.mrb[0].mxu0
        %542 = vmatprep.mubr.f32.mxu0 0.0
        %543 = vmatmul.mubr.f32.gmra.mrb[0].mxu0 %v353
        %v544 = vpop.f32.mrb[0].mxu0
        %v545 = vadd.f32 %v416, %v544
        %v546 = vpop.f32.mrb[0].mxu0
        %547 = vmatprep.mubr.f32.mxu0 0.0
        %548 = vmatmul.mubr.f32.gmra.mrb[0].mxu0 %v354
        %v549 = vpop.f32.mrb[0].mxu0
        %v550 = vadd.f32 %v416, %v549
        %v551 = vpop.f32.mrb[0].mxu0
        %552 = vmatprep.mubr.f32.mxu0 0.0
        %553 = vmatmul.mubr.f32.gmra.mrb[0].mxu0 %v355
        %v554 = vpop.f32.mrb[0].mxu0
        %v555 = vadd.f32 %v416, %v554
        %v556 = vpop.f32.mrb[0].mxu0
        %557 = vmatprep.mubr.f32.mxu0 0.0
        %558 = vmatmul.mubr.f32.gmra.mrb[0].mxu0 %v356
        %v559 = vpop.f32.mrb[0].mxu0
        %v560 = vadd.f32 %v416, %v559
        %v561 = vpop.f32.mrb[0].mxu0
        %562 = vmatprep.mubr.f32.mxu0 0.0
        %563 = vmatmul.mubr.f32.gmra.mrb[0].mxu0 %v357
        %v564 = vpop.f32.mrb[0].mxu0
        %v565 = vadd.f32 %v416, %v564
        %v566 = vpop.f32.mrb[0].mxu0
        %567 = vmatprep.mubr.f32.mxu0 0.0
        %568 = vmatmul.mubr.f32.gmra.mrb[0].mxu0 %v358
        %v569 = vpop.f32.mrb[0].mxu0
        %v570 = vadd.f32 %v416, %v569
        %v571 = vpop.f32.mrb[0].mxu0
        %572 = vmatprep.mubr.f32.mxu0 0.0
        %573 = vmatmul.mubr.f32.gmra.mrb[0].mxu0 %v359
        %v574 = vpop.f32.mrb[0].mxu0
        %v575 = vadd.f32 %v416, %v574
        %v576 = vpop.f32.mrb[0].mxu0
        %577 = vmatprep.mubr.f32.mxu0 0.0
        %578 = vmatmul.mubr.f32.gmra.mrb[0].mxu0 %v360
        %v579 = vpop.f32.mrb[0].mxu0
        %v580 = vadd.f32 %v416, %v579
        %v581 = vpop.f32.mrb[0].mxu0
        %582 = vmatprep.mubr.f32.mxu0 0.0
        %583 = vmatmul.mubr.f32.gmra.mrb[0].mxu0 %v361
        %v584 = vpop.f32.mrb[0].mxu0
        %v585 = vadd.f32 %v416, %v584
        %v586 = vpop.f32.mrb[0].mxu0
        %587 = vmatprep.mubr.f32.mxu0 0.0
        %588 = vmatmul.mubr.f32.gmra.mrb[0].mxu0 %v362
        %v589 = vpop.f32.mrb[0].mxu0
        %v590 = vadd.f32 %v416, %v589
        %v591 = vpop.f32.mrb[0].mxu0
        %592 = vmatprep.mubr.f32.mxu0 0.0
        %593 = vmatmul.mubr.f32.gmra.mrb[0].mxu0 %v363
        %v594 = vpop.f32.mrb[0].mxu0
        %v595 = vadd.f32 %v416, %v594
        %v596 = vpop.f32.mrb[0].mxu0
        %597 = vmatprep.mubr.f32.mxu0 0.0
        %598 = vmatmul.mubr.f32.gmra.mrb[0].mxu0 %v364
        %v599 = vpop.f32.mrb[0].mxu0
        %v600 = vadd.f32 %v416, %v599
        %v601 = vpop.f32.mrb[0].mxu0
        %602 = vmatprep.mubr.f32.mxu0 0.0
        %603 = vmatmul.mubr.f32.gmra.mrb[0].mxu0 %v365
        %v604 = vpop.f32.mrb[0].mxu0
        %v605 = vadd.f32 %v416, %v604
        %v606 = vpop.f32.mrb[0].mxu0
        %607 = vmatprep.mubr.f32.mxu0 0.0
        %608 = vmatmul.mubr.f32.gmra.mrb[0].mxu0 %v366
        %v609 = vpop.f32.mrb[0].mxu0
        %v610 = vadd.f32 %v416, %v609
        %v611 = vpop.f32.mrb[0].mxu0
        %612 = vmatprep.mubr.f32.mxu0 0.0
        %613 = vmatmul.mubr.f32.gmra.mrb[0].mxu0 %v367
        %v614 = vpop.f32.mrb[0].mxu0
        %v615 = vadd.f32 %v416, %v614
        %v616 = vpop.f32.mrb[0].mxu0
        %617 = vmatprep.mubr.f32.mxu0 0.0
        %618 = vmatmul.mubr.f32.gmra.mrb[0].mxu0 %v368
        %v619 = vpop.f32.mrb[0].mxu0
        %v620 = vadd.f32 %v416, %v619
        %v621 = vpop.f32.mrb[0].mxu0
        %622 = vmatprep.mubr.f32.mxu0 0.0
        %623 = vmatmul.mubr.f32.gmra.mrb[0].mxu0 %v369
        %v624 = vpop.f32.mrb[0].mxu0
        %v625 = vadd.f32 %v416, %v624
        %v626 = vpop.f32.mrb[0].mxu0
        %627 = vmatprep.mubr.f32.mxu0 0.0
        %628 = vmatmul.mubr.f32.gmra.mrb[0].mxu0 %v370
        %v629 = vpop.f32.mrb[0].mxu0
        %v630 = vadd.f32 %v416, %v629
        %v631 = vpop.f32.mrb[0].mxu0
        %632 = vmatprep.mubr.f32.mxu0 0.0
        %633 = vmatmul.mubr.f32.gmra.mrb[0].mxu0 %v371
        %v634 = vpop.f32.mrb[0].mxu0
        %v635 = vadd.f32 %v416, %v634
        %v636 = vpop.f32.mrb[0].mxu0
        %637 = vmatprep.mubr.f32.mxu0 0.0
        %638 = vmatmul.mubr.f32.gmra.mrb[0].mxu0 %v372
        %v639 = vpop.f32.mrb[0].mxu0
        %v640 = vadd.f32 %v416, %v639
        %v641 = vpop.f32.mrb[0].mxu0
        %642 = vmatprep.mubr.f32.mxu0 0.0
        %643 = vmatmul.mubr.f32.gmra.mrb[0].mxu0 %v373
        %v644 = vpop.f32.mrb[0].mxu0
        %v645 = vadd.f32 %v416, %v644
        %v646 = vpop.f32.mrb[0].mxu0
        %647 = vmatprep.mubr.f32.mxu0 0.0
        %648 = vmatmul.mubr.f32.gmra.mrb[0].mxu0 %v374
        %v649 = vpop.f32.mrb[0].mxu0
        %v650 = vadd.f32 %v416, %v649
        %v651 = vpop.f32.mrb[0].mxu0
        %652 = vmatprep.mubr.f32.mxu0 0.0
        %653 = vmatmul.mubr.f32.gmra.mrb[0].mxu0 %v375
        %v654 = vpop.f32.mrb[0].mxu0
        %v655 = vadd.f32 %v416, %v654
        %v656 = vpop.f32.mrb[0].mxu0
        %657 = vmatprep.mubr.f32.mxu0 0.0
        %658 = vmatmul.mubr.f32.gmra.mrb[0].mxu0 %v376
        %v659 = vpop.f32.mrb[0].mxu0
        %v660 = vadd.f32 %v416, %v659
        %v661 = vpop.f32.mrb[0].mxu0
        %662 = vmatprep.mubr.f32.mxu0 0.0
        %663 = vmatmul.mubr.f32.gmra.mrb[0].mxu0 %v377
        %v664 = vpop.f32.mrb[0].mxu0
        %v665 = vadd.f32 %v416, %v664
        %v666 = vpop.f32.mrb[0].mxu0
        %667 = vmatprep.mubr.f32.mxu0 0.0
        %668 = vmatmul.mubr.f32.gmra.mrb[0].mxu0 %v378
        %v669 = vpop.f32.mrb[0].mxu0
        %v670 = vadd.f32 %v416, %v669
        %v671 = vpop.f32.mrb[0].mxu0
        %672 = vmatprep.mubr.f32.mxu0 0.0
        %673 = vmatmul.mubr.f32.gmra.mrb[0].mxu0 %v379
        %v674 = vpop.f32.mrb[0].mxu0
        %v675 = vadd.f32 %v416, %v674
        %v676 = vpop.f32.mrb[0].mxu0
        %677 = vmatprep.mubr.f32.mxu0 0.0
        %678 = vmatmul.mubr.f32.gmra.mrb[0].mxu0 %v380
        %v679 = vpop.f32.mrb[0].mxu0
        %v680 = vadd.f32 %v416, %v679
        %v681 = vpop.f32.mrb[0].mxu0
        %682 = vmatprep.mubr.f32.mxu0 0.0
        %683 = vmatmul.mubr.f32.gmra.mrb[0].mxu0 %v381
        %v684 = vpop.f32.mrb[0].mxu0
        %v685 = vadd.f32 %v416, %v684
        %v686 = vpop.f32.mrb[0].mxu0
        %687 = vmatprep.mubr.f32.mxu0 0.0
        %688 = vmatmul.mubr.f32.gmra.mrb[0].mxu0 %v382
        %v689 = vpop.f32.mrb[0].mxu0
        %v690 = vadd.f32 %v416, %v689
        %v691 = vpop.f32.mrb[0].mxu0
        %692 = vmatprep.mubr.f32.mxu0 0.0
        %693 = vmatmul.mubr.f32.gmra.mrb[0].mxu0 %v383
        %v694 = vpop.f32.mrb[0].mxu0
        %v695 = vadd.f32 %v416, %v694
        %v696 = vpop.f32.mrb[0].mxu0
        %697 = vmatprep.mubr.f32.mxu0 0.0
        %698 = vmatmul.mubr.f32.gmra.mrb[0].mxu0 %v384
        %v699 = vpop.f32.mrb[0].mxu0
        %v700 = vadd.f32 %v416, %v699
        %v701 = vpop.f32.mrb[0].mxu0
        %702 = vmatprep.mubr.f32.mxu0 0.0
        %703 = vmatmul.mubr.f32.gmra.mrb[0].mxu0 %v385
        %v704 = vpop.f32.mrb[0].mxu0
        %v705 = vadd.f32 %v416, %v704
        %v706 = vpop.f32.mrb[0].mxu0
        %707 = vmatprep.mubr.f32.mxu0 0.0
        %708 = vmatmul.mubr.f32.gmra.mrb[0].mxu0 %v386
        %v709 = vpop.f32.mrb[0].mxu0
        %v710 = vadd.f32 %v416, %v709
        %v711 = vpop.f32.mrb[0].mxu0
        %712 = vmatprep.mubr.f32.mxu0 0.0
        %713 = vmatmul.mubr.f32.gmra.mrb[0].mxu0 %v387
        %v714 = vpop.f32.mrb[0].mxu0
        %v715 = vadd.f32 %v416, %v714
        %v716 = vpop.f32.mrb[0].mxu0
        %717 = vmatprep.mubr.f32.mxu0 0.0
        %718 = vmatmul.mubr.f32.gmra.mrb[0].mxu0 %v388
        %v719 = vpop.f32.mrb[0].mxu0
        %v720 = vadd.f32 %v416, %v719
        %v721 = vpop.f32.mrb[0].mxu0
        %722 = vmatprep.mubr.f32.mxu0 0.0
        %723 = vmatmul.mubr.f32.gmra.mrb[0].mxu0 %v389
        %v724 = vpop.f32.mrb[0].mxu0
        %v725 = vadd.f32 %v416, %v724
        %v726 = vpop.f32.mrb[0].mxu0
        %727 = vmatprep.mubr.f32.mxu0 0.0
        %728 = vmatmul.mubr.f32.gmra.mrb[0].mxu0 %v390
        %v729 = vpop.f32.mrb[0].mxu0
        %v730 = vadd.f32 %v416, %v729
        %v731 = vpop.f32.mrb[0].mxu0
        %732 = vmatprep.mubr.f32.mxu0 0.0
        %733 = vmatmul.mubr.f32.gmra.mrb[0].mxu0 %v391
        %v734 = vpop.f32.mrb[0].mxu0
        %v735 = vadd.f32 %v416, %v734
        %v736 = vpop.f32.mrb[0].mxu0
        %737 = vmatprep.mubr.f32.mxu0 0.0
        %738 = vmatmul.mubr.f32.gmra.mrb[0].mxu0 %v392
        %v739 = vpop.f32.mrb[0].mxu0
        %v740 = vadd.f32 %v416, %v739
        %v741 = vpop.f32.mrb[0].mxu0
        %742 = vmatprep.mubr.f32.mxu0 0.0
        %743 = vmatmul.mubr.f32.gmra.mrb[0].mxu0 %v393
        %v744 = vpop.f32.mrb[0].mxu0
        %v745 = vadd.f32 %v416, %v744
        %v746 = vpop.f32.mrb[0].mxu0
        %747 = vmatprep.mubr.f32.mxu0 0.0
        %748 = vmatmul.mubr.f32.gmra.mrb[0].mxu0 %v394
        %v749 = vpop.f32.mrb[0].mxu0
        %v750 = vadd.f32 %v416, %v749
        %v751 = vpop.f32.mrb[0].mxu0
        %752 = vdwg.mxu0
        %v753 = vmax.f32 %v485, 0.0
        %v754 = vmax.f32 %v490, 0.0
        %v755 = vmax.f32 %v495, 0.0
        %v756 = vmax.f32 %v500, 0.0
        %v757 = vmax.f32 %v505, 0.0
        %v758 = vmax.f32 %v510, 0.0
        %v759 = vmax.f32 %v515, 0.0
        %v760 = vmax.f32 %v520, 0.0
        %v761 = vmax.f32 %v525, 0.0
        %v762 = vmax.f32 %v530, 0.0
        %v763 = vmax.f32 %v535, 0.0
        %v764 = vmax.f32 %v540, 0.0
        %v765 = vmax.f32 %v545, 0.0
        %v766 = vmax.f32 %v550, 0.0
        %v767 = vmax.f32 %v555, 0.0
        %v768 = vmax.f32 %v560, 0.0
        %v769 = vmax.f32 %v565, 0.0
        %v770 = vmax.f32 %v570, 0.0
        %v771 = vmax.f32 %v575, 0.0
        %v772 = vmax.f32 %v580, 0.0
        %v773 = vmax.f32 %v585, 0.0
        %v774 = vmax.f32 %v590, 0.0
        %v775 = vmax.f32 %v595, 0.0
        %v776 = vmax.f32 %v600, 0.0
        %v777 = vmax.f32 %v605, 0.0
        %v778 = vmax.f32 %v610, 0.0
        %v779 = vmax.f32 %v615, 0.0
        %v780 = vmax.f32 %v620, 0.0
        %v781 = vmax.f32 %v625, 0.0
        %v782 = vmax.f32 %v630, 0.0
        %v783 = vmax.f32 %v635, 0.0
        %v784 = vmax.f32 %v640, 0.0
        %v785 = vmax.f32 %v645, 0.0
        %v786 = vmax.f32 %v650, 0.0
        %v787 = vmax.f32 %v655, 0.0
        %v788 = vmax.f32 %v660, 0.0
        %v789 = vmax.f32 %v665, 0.0
        %v790 = vmax.f32 %v670, 0.0
        %v791 = vmax.f32 %v675, 0.0
        %v792 = vmax.f32 %v680, 0.0
        %v793 = vmax.f32 %v685, 0.0
        %v794 = vmax.f32 %v690, 0.0
        %v795 = vmax.f32 %v695, 0.0
        %v796 = vmax.f32 %v700, 0.0
        %v797 = vmax.f32 %v705, 0.0
        %v798 = vmax.f32 %v710, 0.0
        %v799 = vmax.f32 %v715, 0.0
        %v800 = vmax.f32 %v720, 0.0
        %v801 = vmax.f32 %v725, 0.0
        %v802 = vmax.f32 %v730, 0.0
        %v803 = vmax.f32 %v735, 0.0
        %v804 = vmax.f32 %v740, 0.0
        %v805 = vmax.f32 %v745, 0.0
        %v806 = vmax.f32 %v750, 0.0
        %v807 = vmin.f32 %v753, 6.0
        %v808 = vmin.f32 %v754, 6.0
        %v809 = vmin.f32 %v755, 6.0
        %v810 = vmin.f32 %v756, 6.0
        %v811 = vmin.f32 %v757, 6.0
        %v812 = vmin.f32 %v758, 6.0
        %v813 = vmin.f32 %v759, 6.0
        %v814 = vmin.f32 %v760, 6.0
        %v815 = vmin.f32 %v761, 6.0
        %v816 = vmin.f32 %v762, 6.0
        %v817 = vmin.f32 %v763, 6.0
        %v818 = vmin.f32 %v764, 6.0
        %v819 = vmin.f32 %v765, 6.0
        %v820 = vmin.f32 %v766, 6.0
        %v821 = vmin.f32 %v767, 6.0
        %v822 = vmin.f32 %v768, 6.0
        %v823 = vmin.f32 %v769, 6.0
        %v824 = vmin.f32 %v770, 6.0
        %v825 = vmin.f32 %v771, 6.0
        %v826 = vmin.f32 %v772, 6.0
        %v827 = vmin.f32 %v773, 6.0
        %v828 = vmin.f32 %v774, 6.0
        %v829 = vmin.f32 %v775, 6.0
        %v830 = vmin.f32 %v776, 6.0
        %v831 = vmin.f32 %v777, 6.0
        %v832 = vmin.f32 %v778, 6.0
        %v833 = vmin.f32 %v779, 6.0
        %v834 = vmin.f32 %v780, 6.0
        %v835 = vmin.f32 %v781, 6.0
        %v836 = vmin.f32 %v782, 6.0
        %v837 = vmin.f32 %v783, 6.0
        %v838 = vmin.f32 %v784, 6.0
        %v839 = vmin.f32 %v785, 6.0
        %v840 = vmin.f32 %v786, 6.0
        %v841 = vmin.f32 %v787, 6.0
        %v842 = vmin.f32 %v788, 6.0
        %v843 = vmin.f32 %v789, 6.0
        %v844 = vmin.f32 %v790, 6.0
        %v845 = vmin.f32 %v791, 6.0
        %v846 = vmin.f32 %v792, 6.0
        %v847 = vmin.f32 %v793, 6.0
        %v848 = vmin.f32 %v794, 6.0
        %v849 = vmin.f32 %v795, 6.0
        %v850 = vmin.f32 %v796, 6.0
        %v851 = vmin.f32 %v797, 6.0
        %v852 = vmin.f32 %v798, 6.0
        %v853 = vmin.f32 %v799, 6.0
        %v854 = vmin.f32 %v800, 6.0
        %v855 = vmin.f32 %v801, 6.0
        %v856 = vmin.f32 %v802, 6.0
        %v857 = vmin.f32 %v803, 6.0
        %v858 = vmin.f32 %v804, 6.0
        %v859 = vmin.f32 %v805, 6.0
        %v860 = vmin.f32 %v806, 6.0
        %v861 = vlaneseq
        %v862 = vshrl.u32 %v861, 7
        %v863 = vadd.s32 %v862, 8
        %v864 = vadd.s32 %v862, 16
        %vm865 = vcmp.ge.s32.totalorder %v862, 1
        %vm866 = vcmp.ge.s32.totalorder %v863, 1
        %vm867 = vcmp.ge.s32.totalorder %v864, 1
        %vm868 = vmand 0, %vm865
        %vm869 = vmand 0, %vm866
        %vm870 = vmand 0, %vm867
        %vm871 = vmand 1, %vm865
        %vm872 = vmand 1, %vm866
        %vm873 = vmand 1, %vm867
        %vm874 = vcmp.le.s32.totalorder %v862, 16
        %vm875 = vcmp.le.s32.totalorder %v863, 16
        %vm876 = vcmp.le.s32.totalorder %v864, 16
        %vm877 = vmand %vm868, %vm874
        %vm878 = vmand %vm869, %vm875
        %vm879 = vmand %vm870, %vm876
        %vm880 = vmand %vm871, %vm874
        %vm881 = vmand %vm872, %vm875
        %vm882 = vmand %vm873, %vm876
        %v883 = vsel %vm877, %v807, 0.0
        %v884 = vsel %vm878, %v808, 0.0
        %v885 = vsel %vm879, %v809, 0.0
        %v886 = vsel %vm880, %v810, 0.0
        %v887 = vsel %vm881, %v811, 0.0
        %v888 = vsel %vm882, %v812, 0.0
        %v889 = vsel %vm880, %v813, 0.0
        %v890 = vsel %vm881, %v814, 0.0
        %v891 = vsel %vm882, %v815, 0.0
        %v892 = vsel %vm880, %v816, 0.0
        %v893 = vsel %vm881, %v817, 0.0
        %v894 = vsel %vm882, %v818, 0.0
        %v895 = vsel %vm880, %v819, 0.0
        %v896 = vsel %vm881, %v820, 0.0
        %v897 = vsel %vm882, %v821, 0.0
        %v898 = vsel %vm880, %v822, 0.0
        %v899 = vsel %vm881, %v823, 0.0
        %v900 = vsel %vm882, %v824, 0.0
        %v901 = vsel %vm880, %v825, 0.0
        %v902 = vsel %vm881, %v826, 0.0
        %v903 = vsel %vm882, %v827, 0.0
        %v904 = vsel %vm880, %v828, 0.0
        %v905 = vsel %vm881, %v829, 0.0
        %v906 = vsel %vm882, %v830, 0.0
        %v907 = vsel %vm880, %v831, 0.0
        %v908 = vsel %vm881, %v832, 0.0
        %v909 = vsel %vm882, %v833, 0.0
        %v910 = vsel %vm880, %v834, 0.0
        %v911 = vsel %vm881, %v835, 0.0
        %v912 = vsel %vm882, %v836, 0.0
        %v913 = vsel %vm880, %v837, 0.0
        %v914 = vsel %vm881, %v838, 0.0
        %v915 = vsel %vm882, %v839, 0.0
        %v916 = vsel %vm880, %v840, 0.0
        %v917 = vsel %vm881, %v841, 0.0
        %v918 = vsel %vm882, %v842, 0.0
        %v919 = vsel %vm880, %v843, 0.0
        %v920 = vsel %vm881, %v844, 0.0
        %v921 = vsel %vm882, %v845, 0.0
        %v922 = vsel %vm880, %v846, 0.0
        %v923 = vsel %vm881, %v847, 0.0
        %v924 = vsel %vm882, %v848, 0.0
        %v925 = vsel %vm880, %v849, 0.0
        %v926 = vsel %vm881, %v850, 0.0
        %v927 = vsel %vm882, %v851, 0.0
        %v928 = vsel %vm880, %v852, 0.0
        %v929 = vsel %vm881, %v853, 0.0
        %v930 = vsel %vm882, %v854, 0.0
        %v931 = vsel %vm880, %v855, 0.0
        %v932 = vsel %vm881, %v856, 0.0
        %v933 = vsel %vm882, %v857, 0.0
        %v934 = vsel %vm877, %v858, 0.0
        %v935 = vsel %vm878, %v859, 0.0
        %v936 = vsel %vm879, %v860, 0.0
        %v937 = vld [vmem:[#allocation7] sm:$0xff]
        %v938 = vld [vmem:[#allocation7 + $0x8] sm:$0x1]
        %v939 = vlaneseq
        %v940 = vshrl.u32 %v939, 7
        %v941 = vsub.s32 0, %v940
        %v942 = vrot.slane %v937, %v941
        %v943 = vmul.f32 %v883, %v942
        %v944 = vmul.f32 %v884, %v942
        %v945 = vmul.f32 %v886, %v942
        %v946 = vmul.f32 %v887, %v942
        %v947 = vmul.f32 %v889, %v942
        %v948 = vmul.f32 %v890, %v942
        %v949 = vmul.f32 %v892, %v942
        %v950 = vmul.f32 %v893, %v942
        %v951 = vmul.f32 %v895, %v942
        %v952 = vmul.f32 %v896, %v942
        %v953 = vmul.f32 %v898, %v942
        %v954 = vmul.f32 %v899, %v942
        %v955 = vmul.f32 %v901, %v942
        %v956 = vmul.f32 %v902, %v942
        %v957 = vmul.f32 %v904, %v942
        %v958 = vmul.f32 %v905, %v942
        %v959 = vmul.f32 %v907, %v942
        %v960 = vmul.f32 %v908, %v942
        %v961 = vmul.f32 %v910, %v942
        %v962 = vmul.f32 %v911, %v942
        %v963 = vmul.f32 %v913, %v942
        %v964 = vmul.f32 %v914, %v942
        %v965 = vmul.f32 %v916, %v942
        %v966 = vmul.f32 %v917, %v942
        %v967 = vmul.f32 %v919, %v942
        %v968 = vmul.f32 %v920, %v942
        %v969 = vmul.f32 %v922, %v942
        %v970 = vmul.f32 %v923, %v942
        %v971 = vmul.f32 %v925, %v942
        %v972 = vmul.f32 %v926, %v942
        %v973 = vmul.f32 %v928, %v942
        %v974 = vmul.f32 %v929, %v942
        %v975 = vlaneseq
        %v976 = vshrl.u32 %v975, 7
        %v977 = vsub.s32 1, %v976
        %v978 = vrot.slane %v937, %v977
        %v979 = vmul.f32 %v883, %v978
        %v980 = vmul.f32 %v884, %v978
        %v981 = vmul.f32 %v885, %v978
        %v982 = vmul.f32 %v886, %v978
        %v983 = vmul.f32 %v887, %v978
        %v984 = vmul.f32 %v888, %v978
        %v985 = vmul.f32 %v889, %v978
        %v986 = vmul.f32 %v890, %v978
        %v987 = vmul.f32 %v891, %v978
        %v988 = vmul.f32 %v892, %v978
        %v989 = vmul.f32 %v893, %v978
        %v990 = vmul.f32 %v894, %v978
        %v991 = vmul.f32 %v895, %v978
        %v992 = vmul.f32 %v896, %v978
        %v993 = vmul.f32 %v897, %v978
        %v994 = vmul.f32 %v898, %v978
        %v995 = vmul.f32 %v899, %v978
        %v996 = vmul.f32 %v900, %v978
        %v997 = vmul.f32 %v901, %v978
        %v998 = vmul.f32 %v902, %v978
        %v999 = vmul.f32 %v903, %v978
        %v1000 = vmul.f32 %v904, %v978
        %v1001 = vmul.f32 %v905, %v978
        %v1002 = vmul.f32 %v906, %v978
        %v1003 = vmul.f32 %v907, %v978
        %v1004 = vmul.f32 %v908, %v978
        %v1005 = vmul.f32 %v909, %v978
        %v1006 = vmul.f32 %v910, %v978
        %v1007 = vmul.f32 %v911, %v978
        %v1008 = vmul.f32 %v912, %v978
        %v1009 = vmul.f32 %v913, %v978
        %v1010 = vmul.f32 %v914, %v978
        %v1011 = vmul.f32 %v915, %v978
        %v1012 = vmul.f32 %v916, %v978
        %v1013 = vmul.f32 %v917, %v978
        %v1014 = vmul.f32 %v918, %v978
        %v1015 = vmul.f32 %v919, %v978
        %v1016 = vmul.f32 %v920, %v978
        %v1017 = vmul.f32 %v921, %v978
        %v1018 = vmul.f32 %v922, %v978
        %v1019 = vmul.f32 %v923, %v978
        %v1020 = vmul.f32 %v924, %v978
        %v1021 = vmul.f32 %v925, %v978
        %v1022 = vmul.f32 %v926, %v978
        %v1023 = vmul.f32 %v927, %v978
        %v1024 = vmul.f32 %v928, %v978
        %v1025 = vmul.f32 %v929, %v978
        %v1026 = vmul.f32 %v930, %v978
        %vm1075 = vcmask 1046528
        %v1076 = vrot.slane %v979, 1
        %v1077 = vrot.slane %v980, 1
        %v1078 = vsel %vm1075, %v1076, %v1077
        %v1079 = vrot.slane %v981, 1
        %v1080 = vsel %vm1075, %v1077, %v1079
        %v1081 = vrot.slane %v982, 1
        %v1082 = vrot.slane %v983, 1
        %v1083 = vsel %vm1075, %v1081, %v1082
        %v1084 = vrot.slane %v984, 1
        %v1085 = vsel %vm1075, %v1082, %v1084
        %v1086 = vrot.slane %v985, 1
        %v1087 = vrot.slane %v986, 1
        %v1088 = vsel %vm1075, %v1086, %v1087
        %v1089 = vrot.slane %v987, 1
        %v1090 = vsel %vm1075, %v1087, %v1089
        %v1091 = vrot.slane %v988, 1
        %v1092 = vrot.slane %v989, 1
        %v1093 = vsel %vm1075, %v1091, %v1092
        %v1094 = vrot.slane %v990, 1
        %v1095 = vsel %vm1075, %v1092, %v1094
        %v1096 = vrot.slane %v991, 1
        %v1097 = vrot.slane %v992, 1
        %v1098 = vsel %vm1075, %v1096, %v1097
        %v1099 = vrot.slane %v993, 1
        %v1100 = vsel %vm1075, %v1097, %v1099
        %v1101 = vrot.slane %v994, 1
        %v1102 = vrot.slane %v995, 1
        %v1103 = vsel %vm1075, %v1101, %v1102
        %v1104 = vrot.slane %v996, 1
        %v1105 = vsel %vm1075, %v1102, %v1104
        %v1106 = vrot.slane %v997, 1
        %v1107 = vrot.slane %v998, 1
        %v1108 = vsel %vm1075, %v1106, %v1107
        %v1109 = vrot.slane %v999, 1
        %v1110 = vsel %vm1075, %v1107, %v1109
        %v1111 = vrot.slane %v1000, 1
        %v1112 = vrot.slane %v1001, 1
        %v1113 = vsel %vm1075, %v1111, %v1112
        %v1114 = vrot.slane %v1002, 1
        %v1115 = vsel %vm1075, %v1112, %v1114
        %v1116 = vrot.slane %v1003, 1
        %v1117 = vrot.slane %v1004, 1
        %v1118 = vsel %vm1075, %v1116, %v1117
        %v1119 = vrot.slane %v1005, 1
        %v1120 = vsel %vm1075, %v1117, %v1119
        %v1121 = vrot.slane %v1006, 1
        %v1122 = vrot.slane %v1007, 1
        %v1123 = vsel %vm1075, %v1121, %v1122
        %v1124 = vrot.slane %v1008, 1
        %v1125 = vsel %vm1075, %v1122, %v1124
        %v1126 = vrot.slane %v1009, 1
        %v1127 = vrot.slane %v1010, 1
        %v1128 = vsel %vm1075, %v1126, %v1127
        %v1129 = vrot.slane %v1011, 1
        %v1130 = vsel %vm1075, %v1127, %v1129
        %v1131 = vrot.slane %v1012, 1
        %v1132 = vrot.slane %v1013, 1
        %v1133 = vsel %vm1075, %v1131, %v1132
        %v1134 = vrot.slane %v1014, 1
        %v1135 = vsel %vm1075, %v1132, %v1134
        %v1136 = vrot.slane %v1015, 1
        %v1137 = vrot.slane %v1016, 1
        %v1138 = vsel %vm1075, %v1136, %v1137
        %v1139 = vrot.slane %v1017, 1
        %v1140 = vsel %vm1075, %v1137, %v1139
        %v1141 = vrot.slane %v1018, 1
        %v1142 = vrot.slane %v1019, 1
        %v1143 = vsel %vm1075, %v1141, %v1142
        %v1144 = vrot.slane %v1020, 1
        %v1145 = vsel %vm1075, %v1142, %v1144
        %v1146 = vrot.slane %v1021, 1
        %v1147 = vrot.slane %v1022, 1
        %v1148 = vsel %vm1075, %v1146, %v1147
        %v1149 = vrot.slane %v1023, 1
        %v1150 = vsel %vm1075, %v1147, %v1149
        %v1151 = vrot.slane %v1024, 1
        %v1152 = vrot.slane %v1025, 1
        %v1153 = vsel %vm1075, %v1151, %v1152
        %v1154 = vrot.slane %v1026, 1
        %v1155 = vsel %vm1075, %v1152, %v1154
        %v1188 = vadd.f32 %v943, %v1078
        %v1189 = vadd.f32 %v944, %v1080
        %v1190 = vadd.f32 %v945, %v1083
        %v1191 = vadd.f32 %v946, %v1085
        %v1192 = vadd.f32 %v947, %v1088
        %v1193 = vadd.f32 %v948, %v1090
        %v1194 = vadd.f32 %v949, %v1093
        %v1195 = vadd.f32 %v950, %v1095
        %v1196 = vadd.f32 %v951, %v1098
        %v1197 = vadd.f32 %v952, %v1100
        %v1198 = vadd.f32 %v953, %v1103
        %v1199 = vadd.f32 %v954, %v1105
        %v1200 = vadd.f32 %v955, %v1108
        %v1201 = vadd.f32 %v956, %v1110
        %v1202 = vadd.f32 %v957, %v1113
        %v1203 = vadd.f32 %v958, %v1115
        %v1204 = vadd.f32 %v959, %v1118
        %v1205 = vadd.f32 %v960, %v1120
        %v1206 = vadd.f32 %v961, %v1123
        %v1207 = vadd.f32 %v962, %v1125
        %v1208 = vadd.f32 %v963, %v1128
        %v1209 = vadd.f32 %v964, %v1130
        %v1210 = vadd.f32 %v965, %v1133
        %v1211 = vadd.f32 %v966, %v1135
        %v1212 = vadd.f32 %v967, %v1138
        %v1213 = vadd.f32 %v968, %v1140
        %v1214 = vadd.f32 %v969, %v1143
        %v1215 = vadd.f32 %v970, %v1145
        %v1216 = vadd.f32 %v971, %v1148
        %v1217 = vadd.f32 %v972, %v1150
        %v1218 = vadd.f32 %v973, %v1153
        %v1219 = vadd.f32 %v974, %v1155
        %v1220 = vlaneseq
        %v1221 = vshrl.u32 %v1220, 7
        %v1222 = vsub.s32 2, %v1221
        %v1223 = vrot.slane %v937, %v1222
        %v1224 = vmul.f32 %v883, %v1223
        %v1225 = vmul.f32 %v884, %v1223
        %v1226 = vmul.f32 %v885, %v1223
        %v1227 = vmul.f32 %v886, %v1223
        %v1228 = vmul.f32 %v887, %v1223
        %v1229 = vmul.f32 %v888, %v1223
        %v1230 = vmul.f32 %v889, %v1223
        %v1231 = vmul.f32 %v890, %v1223
        %v1232 = vmul.f32 %v891, %v1223
        %v1233 = vmul.f32 %v892, %v1223
        %v1234 = vmul.f32 %v893, %v1223
        %v1235 = vmul.f32 %v894, %v1223
        %v1236 = vmul.f32 %v895, %v1223
        %v1237 = vmul.f32 %v896, %v1223
        %v1238 = vmul.f32 %v897, %v1223
        %v1239 = vmul.f32 %v898, %v1223
        %v1240 = vmul.f32 %v899, %v1223
        %v1241 = vmul.f32 %v900, %v1223
        %v1242 = vmul.f32 %v901, %v1223
        %v1243 = vmul.f32 %v902, %v1223
        %v1244 = vmul.f32 %v903, %v1223
        %v1245 = vmul.f32 %v904, %v1223
        %v1246 = vmul.f32 %v905, %v1223
        %v1247 = vmul.f32 %v906, %v1223
        %v1248 = vmul.f32 %v907, %v1223
        %v1249 = vmul.f32 %v908, %v1223
        %v1250 = vmul.f32 %v909, %v1223
        %v1251 = vmul.f32 %v910, %v1223
        %v1252 = vmul.f32 %v911, %v1223
        %v1253 = vmul.f32 %v912, %v1223
        %v1254 = vmul.f32 %v913, %v1223
        %v1255 = vmul.f32 %v914, %v1223
        %v1256 = vmul.f32 %v915, %v1223
        %v1257 = vmul.f32 %v916, %v1223
        %v1258 = vmul.f32 %v917, %v1223
        %v1259 = vmul.f32 %v918, %v1223
        %v1260 = vmul.f32 %v919, %v1223
        %v1261 = vmul.f32 %v920, %v1223
        %v1262 = vmul.f32 %v921, %v1223
        %v1263 = vmul.f32 %v922, %v1223
        %v1264 = vmul.f32 %v923, %v1223
        %v1265 = vmul.f32 %v924, %v1223
        %v1266 = vmul.f32 %v925, %v1223
        %v1267 = vmul.f32 %v926, %v1223
        %v1268 = vmul.f32 %v927, %v1223
        %v1269 = vmul.f32 %v928, %v1223
        %v1270 = vmul.f32 %v929, %v1223
        %v1271 = vmul.f32 %v930, %v1223
        %vm1320 = vcmask 1045504
        %v1321 = vrot.slane %v1224, 2
        %v1322 = vrot.slane %v1225, 2
        %v1323 = vsel %vm1320, %v1321, %v1322
        %v1324 = vrot.slane %v1226, 2
        %v1325 = vsel %vm1320, %v1322, %v1324
        %v1326 = vrot.slane %v1227, 2
        %v1327 = vrot.slane %v1228, 2
        %v1328 = vsel %vm1320, %v1326, %v1327
        %v1329 = vrot.slane %v1229, 2
        %v1330 = vsel %vm1320, %v1327, %v1329
        %v1331 = vrot.slane %v1230, 2
        %v1332 = vrot.slane %v1231, 2
        %v1333 = vsel %vm1320, %v1331, %v1332
        %v1334 = vrot.slane %v1232, 2
        %v1335 = vsel %vm1320, %v1332, %v1334
        %v1336 = vrot.slane %v1233, 2
        %v1337 = vrot.slane %v1234, 2
        %v1338 = vsel %vm1320, %v1336, %v1337
        %v1339 = vrot.slane %v1235, 2
        %v1340 = vsel %vm1320, %v1337, %v1339
        %v1341 = vrot.slane %v1236, 2
        %v1342 = vrot.slane %v1237, 2
        %v1343 = vsel %vm1320, %v1341, %v1342
        %v1344 = vrot.slane %v1238, 2
        %v1345 = vsel %vm1320, %v1342, %v1344
        %v1346 = vrot.slane %v1239, 2
        %v1347 = vrot.slane %v1240, 2
        %v1348 = vsel %vm1320, %v1346, %v1347
        %v1349 = vrot.slane %v1241, 2
        %v1350 = vsel %vm1320, %v1347, %v1349
        %v1351 = vrot.slane %v1242, 2
        %v1352 = vrot.slane %v1243, 2
        %v1353 = vsel %vm1320, %v1351, %v1352
        %v1354 = vrot.slane %v1244, 2
        %v1355 = vsel %vm1320, %v1352, %v1354
        %v1356 = vrot.slane %v1245, 2
        %v1357 = vrot.slane %v1246, 2
        %v1358 = vsel %vm1320, %v1356, %v1357
        %v1359 = vrot.slane %v1247, 2
        %v1360 = vsel %vm1320, %v1357, %v1359
        %v1361 = vrot.slane %v1248, 2
        %v1362 = vrot.slane %v1249, 2
        %v1363 = vsel %vm1320, %v1361, %v1362
        %v1364 = vrot.slane %v1250, 2
        %v1365 = vsel %vm1320, %v1362, %v1364
        %v1366 = vrot.slane %v1251, 2
        %v1367 = vrot.slane %v1252, 2
        %v1368 = vsel %vm1320, %v1366, %v1367
        %v1369 = vrot.slane %v1253, 2
        %v1370 = vsel %vm1320, %v1367, %v1369
        %v1371 = vrot.slane %v1254, 2
        %v1372 = vrot.slane %v1255, 2
        %v1373 = vsel %vm1320, %v1371, %v1372
        %v1374 = vrot.slane %v1256, 2
        %v1375 = vsel %vm1320, %v1372, %v1374
        %v1376 = vrot.slane %v1257, 2
        %v1377 = vrot.slane %v1258, 2
        %v1378 = vsel %vm1320, %v1376, %v1377
        %v1379 = vrot.slane %v1259, 2
        %v1380 = vsel %vm1320, %v1377, %v1379
        %v1381 = vrot.slane %v1260, 2
        %v1382 = vrot.slane %v1261, 2
        %v1383 = vsel %vm1320, %v1381, %v1382
        %v1384 = vrot.slane %v1262, 2
        %v1385 = vsel %vm1320, %v1382, %v1384
        %v1386 = vrot.slane %v1263, 2
        %v1387 = vrot.slane %v1264, 2
        %v1388 = vsel %vm1320, %v1386, %v1387
        %v1389 = vrot.slane %v1265, 2
        %v1390 = vsel %vm1320, %v1387, %v1389
        %v1391 = vrot.slane %v1266, 2
        %v1392 = vrot.slane %v1267, 2
        %v1393 = vsel %vm1320, %v1391, %v1392
        %v1394 = vrot.slane %v1268, 2
        %v1395 = vsel %vm1320, %v1392, %v1394
        %v1396 = vrot.slane %v1269, 2
        %v1397 = vrot.slane %v1270, 2
        %v1398 = vsel %vm1320, %v1396, %v1397
        %v1399 = vrot.slane %v1271, 2
        %v1400 = vsel %vm1320, %v1397, %v1399
        %v1433 = vadd.f32 %v1188, %v1323
        %v1434 = vadd.f32 %v1189, %v1325
        %v1435 = vadd.f32 %v1190, %v1328
        %v1436 = vadd.f32 %v1191, %v1330
        %v1437 = vadd.f32 %v1192, %v1333
        %v1438 = vadd.f32 %v1193, %v1335
        %v1439 = vadd.f32 %v1194, %v1338
        %v1440 = vadd.f32 %v1195, %v1340
        %v1441 = vadd.f32 %v1196, %v1343
        %v1442 = vadd.f32 %v1197, %v1345
        %v1443 = vadd.f32 %v1198, %v1348
        %v1444 = vadd.f32 %v1199, %v1350
        %v1445 = vadd.f32 %v1200, %v1353
        %v1446 = vadd.f32 %v1201, %v1355
        %v1447 = vadd.f32 %v1202, %v1358
        %v1448 = vadd.f32 %v1203, %v1360
        %v1449 = vadd.f32 %v1204, %v1363
        %v1450 = vadd.f32 %v1205, %v1365
        %v1451 = vadd.f32 %v1206, %v1368
        %v1452 = vadd.f32 %v1207, %v1370
        %v1453 = vadd.f32 %v1208, %v1373
        %v1454 = vadd.f32 %v1209, %v1375
        %v1455 = vadd.f32 %v1210, %v1378
        %v1456 = vadd.f32 %v1211, %v1380
        %v1457 = vadd.f32 %v1212, %v1383
        %v1458 = vadd.f32 %v1213, %v1385
        %v1459 = vadd.f32 %v1214, %v1388
        %v1460 = vadd.f32 %v1215, %v1390
        %v1461 = vadd.f32 %v1216, %v1393
        %v1462 = vadd.f32 %v1217, %v1395
        %v1463 = vadd.f32 %v1218, %v1398
        %v1464 = vadd.f32 %v1219, %v1400
        %v1465 = vlaneseq
        %v1466 = vshrl.u32 %v1465, 7
        %v1467 = vsub.s32 3, %v1466
        %v1468 = vrot.slane %v937, %v1467
        %v1469 = vmul.f32 %v886, %v1468
        %v1470 = vmul.f32 %v887, %v1468
        %v1471 = vmul.f32 %v889, %v1468
        %v1472 = vmul.f32 %v890, %v1468
        %v1473 = vmul.f32 %v892, %v1468
        %v1474 = vmul.f32 %v893, %v1468
        %v1475 = vmul.f32 %v895, %v1468
        %v1476 = vmul.f32 %v896, %v1468
        %v1477 = vmul.f32 %v898, %v1468
        %v1478 = vmul.f32 %v899, %v1468
        %v1479 = vmul.f32 %v901, %v1468
        %v1480 = vmul.f32 %v902, %v1468
        %v1481 = vmul.f32 %v904, %v1468
        %v1482 = vmul.f32 %v905, %v1468
        %v1483 = vmul.f32 %v907, %v1468
        %v1484 = vmul.f32 %v908, %v1468
        %v1485 = vmul.f32 %v910, %v1468
        %v1486 = vmul.f32 %v911, %v1468
        %v1487 = vmul.f32 %v913, %v1468
        %v1488 = vmul.f32 %v914, %v1468
        %v1489 = vmul.f32 %v916, %v1468
        %v1490 = vmul.f32 %v917, %v1468
        %v1491 = vmul.f32 %v919, %v1468
        %v1492 = vmul.f32 %v920, %v1468
        %v1493 = vmul.f32 %v922, %v1468
        %v1494 = vmul.f32 %v923, %v1468
        %v1495 = vmul.f32 %v925, %v1468
        %v1496 = vmul.f32 %v926, %v1468
        %v1497 = vmul.f32 %v928, %v1468
        %v1498 = vmul.f32 %v929, %v1468
        %v1499 = vmul.f32 %v931, %v1468
        %v1500 = vmul.f32 %v932, %v1468
        %v1501 = vadd.f32 %v1433, %v1469
        %v1502 = vadd.f32 %v1434, %v1470
        %v1503 = vadd.f32 %v1435, %v1471
        %v1504 = vadd.f32 %v1436, %v1472
        %v1505 = vadd.f32 %v1437, %v1473
        %v1506 = vadd.f32 %v1438, %v1474
        %v1507 = vadd.f32 %v1439, %v1475
        %v1508 = vadd.f32 %v1440, %v1476
        %v1509 = vadd.f32 %v1441, %v1477
        %v1510 = vadd.f32 %v1442, %v1478
        %v1511 = vadd.f32 %v1443, %v1479
        %v1512 = vadd.f32 %v1444, %v1480
        %v1513 = vadd.f32 %v1445, %v1481
        %v1514 = vadd.f32 %v1446, %v1482
        %v1515 = vadd.f32 %v1447, %v1483
        %v1516 = vadd.f32 %v1448, %v1484
        %v1517 = vadd.f32 %v1449, %v1485
        %v1518 = vadd.f32 %v1450, %v1486
        %v1519 = vadd.f32 %v1451, %v1487
        %v1520 = vadd.f32 %v1452, %v1488
        %v1521 = vadd.f32 %v1453, %v1489
        %v1522 = vadd.f32 %v1454, %v1490
        %v1523 = vadd.f32 %v1455, %v1491
        %v1524 = vadd.f32 %v1456, %v1492
        %v1525 = vadd.f32 %v1457, %v1493
        %v1526 = vadd.f32 %v1458, %v1494
        %v1527 = vadd.f32 %v1459, %v1495
        %v1528 = vadd.f32 %v1460, %v1496
        %v1529 = vadd.f32 %v1461, %v1497
        %v1530 = vadd.f32 %v1462, %v1498
        %v1531 = vadd.f32 %v1463, %v1499
        %v1532 = vadd.f32 %v1464, %v1500
        %v1533 = vlaneseq
        %v1534 = vshrl.u32 %v1533, 7
        %v1535 = vsub.s32 4, %v1534
        %v1536 = vrot.slane %v937, %v1535
        %v1537 = vmul.f32 %v886, %v1536
        %v1538 = vmul.f32 %v887, %v1536
        %v1539 = vmul.f32 %v888, %v1536
        %v1540 = vmul.f32 %v889, %v1536
        %v1541 = vmul.f32 %v890, %v1536
        %v1542 = vmul.f32 %v891, %v1536
        %v1543 = vmul.f32 %v892, %v1536
        %v1544 = vmul.f32 %v893, %v1536
        %v1545 = vmul.f32 %v894, %v1536
        %v1546 = vmul.f32 %v895, %v1536
        %v1547 = vmul.f32 %v896, %v1536
        %v1548 = vmul.f32 %v897, %v1536
        %v1549 = vmul.f32 %v898, %v1536
        %v1550 = vmul.f32 %v899, %v1536
        %v1551 = vmul.f32 %v900, %v1536
        %v1552 = vmul.f32 %v901, %v1536
        %v1553 = vmul.f32 %v902, %v1536
        %v1554 = vmul.f32 %v903, %v1536
        %v1555 = vmul.f32 %v904, %v1536
        %v1556 = vmul.f32 %v905, %v1536
        %v1557 = vmul.f32 %v906, %v1536
        %v1558 = vmul.f32 %v907, %v1536
        %v1559 = vmul.f32 %v908, %v1536
        %v1560 = vmul.f32 %v909, %v1536
        %v1561 = vmul.f32 %v910, %v1536
        %v1562 = vmul.f32 %v911, %v1536
        %v1563 = vmul.f32 %v912, %v1536
        %v1564 = vmul.f32 %v913, %v1536
        %v1565 = vmul.f32 %v914, %v1536
        %v1566 = vmul.f32 %v915, %v1536
        %v1567 = vmul.f32 %v916, %v1536
        %v1568 = vmul.f32 %v917, %v1536
        %v1569 = vmul.f32 %v918, %v1536
        %v1570 = vmul.f32 %v919, %v1536
        %v1571 = vmul.f32 %v920, %v1536
        %v1572 = vmul.f32 %v921, %v1536
        %v1573 = vmul.f32 %v922, %v1536
        %v1574 = vmul.f32 %v923, %v1536
        %v1575 = vmul.f32 %v924, %v1536
        %v1576 = vmul.f32 %v925, %v1536
        %v1577 = vmul.f32 %v926, %v1536
        %v1578 = vmul.f32 %v927, %v1536
        %v1579 = vmul.f32 %v928, %v1536
        %v1580 = vmul.f32 %v929, %v1536
        %v1581 = vmul.f32 %v930, %v1536
        %v1582 = vmul.f32 %v931, %v1536
        %v1583 = vmul.f32 %v932, %v1536
        %v1584 = vmul.f32 %v933, %v1536
        %v1633 = vrot.slane %v1537, 1
        %v1634 = vrot.slane %v1538, 1
        %v1635 = vsel %vm1075, %v1633, %v1634
        %v1636 = vrot.slane %v1539, 1
        %v1637 = vsel %vm1075, %v1634, %v1636
        %v1638 = vrot.slane %v1540, 1
        %v1639 = vrot.slane %v1541, 1
        %v1640 = vsel %vm1075, %v1638, %v1639
        %v1641 = vrot.slane %v1542, 1
        %v1642 = vsel %vm1075, %v1639, %v1641
        %v1643 = vrot.slane %v1543, 1
        %v1644 = vrot.slane %v1544, 1
        %v1645 = vsel %vm1075, %v1643, %v1644
        %v1646 = vrot.slane %v1545, 1
        %v1647 = vsel %vm1075, %v1644, %v1646
        %v1648 = vrot.slane %v1546, 1
        %v1649 = vrot.slane %v1547, 1
        %v1650 = vsel %vm1075, %v1648, %v1649
        %v1651 = vrot.slane %v1548, 1
        %v1652 = vsel %vm1075, %v1649, %v1651
        %v1653 = vrot.slane %v1549, 1
        %v1654 = vrot.slane %v1550, 1
        %v1655 = vsel %vm1075, %v1653, %v1654
        %v1656 = vrot.slane %v1551, 1
        %v1657 = vsel %vm1075, %v1654, %v1656
        %v1658 = vrot.slane %v1552, 1
        %v1659 = vrot.slane %v1553, 1
        %v1660 = vsel %vm1075, %v1658, %v1659
        %v1661 = vrot.slane %v1554, 1
        %v1662 = vsel %vm1075, %v1659, %v1661
        %v1663 = vrot.slane %v1555, 1
        %v1664 = vrot.slane %v1556, 1
        %v1665 = vsel %vm1075, %v1663, %v1664
        %v1666 = vrot.slane %v1557, 1
        %v1667 = vsel %vm1075, %v1664, %v1666
        %v1668 = vrot.slane %v1558, 1
        %v1669 = vrot.slane %v1559, 1
        %v1670 = vsel %vm1075, %v1668, %v1669
        %v1671 = vrot.slane %v1560, 1
        %v1672 = vsel %vm1075, %v1669, %v1671
        %v1673 = vrot.slane %v1561, 1
        %v1674 = vrot.slane %v1562, 1
        %v1675 = vsel %vm1075, %v1673, %v1674
        %v1676 = vrot.slane %v1563, 1
        %v1677 = vsel %vm1075, %v1674, %v1676
        %v1678 = vrot.slane %v1564, 1
        %v1679 = vrot.slane %v1565, 1
        %v1680 = vsel %vm1075, %v1678, %v1679
        %v1681 = vrot.slane %v1566, 1
        %v1682 = vsel %vm1075, %v1679, %v1681
        %v1683 = vrot.slane %v1567, 1
        %v1684 = vrot.slane %v1568, 1
        %v1685 = vsel %vm1075, %v1683, %v1684
        %v1686 = vrot.slane %v1569, 1
        %v1687 = vsel %vm1075, %v1684, %v1686
        %v1688 = vrot.slane %v1570, 1
        %v1689 = vrot.slane %v1571, 1
        %v1690 = vsel %vm1075, %v1688, %v1689
        %v1691 = vrot.slane %v1572, 1
        %v1692 = vsel %vm1075, %v1689, %v1691
        %v1693 = vrot.slane %v1573, 1
        %v1694 = vrot.slane %v1574, 1
        %v1695 = vsel %vm1075, %v1693, %v1694
        %v1696 = vrot.slane %v1575, 1
        %v1697 = vsel %vm1075, %v1694, %v1696
        %v1698 = vrot.slane %v1576, 1
        %v1699 = vrot.slane %v1577, 1
        %v1700 = vsel %vm1075, %v1698, %v1699
        %v1701 = vrot.slane %v1578, 1
        %v1702 = vsel %vm1075, %v1699, %v1701
        %v1703 = vrot.slane %v1579, 1
        %v1704 = vrot.slane %v1580, 1
        %v1705 = vsel %vm1075, %v1703, %v1704
        %v1706 = vrot.slane %v1581, 1
        %v1707 = vsel %vm1075, %v1704, %v1706
        %v1708 = vrot.slane %v1582, 1
        %v1709 = vrot.slane %v1583, 1
        %v1710 = vsel %vm1075, %v1708, %v1709
        %v1711 = vrot.slane %v1584, 1
        %v1712 = vsel %vm1075, %v1709, %v1711
        %v1745 = vadd.f32 %v1501, %v1635
        %v1746 = vadd.f32 %v1502, %v1637
        %v1747 = vadd.f32 %v1503, %v1640
        %v1748 = vadd.f32 %v1504, %v1642
        %v1749 = vadd.f32 %v1505, %v1645
        %v1750 = vadd.f32 %v1506, %v1647
        %v1751 = vadd.f32 %v1507, %v1650
        %v1752 = vadd.f32 %v1508, %v1652
        %v1753 = vadd.f32 %v1509, %v1655
        %v1754 = vadd.f32 %v1510, %v1657
        %v1755 = vadd.f32 %v1511, %v1660
        %v1756 = vadd.f32 %v1512, %v1662
        %v1757 = vadd.f32 %v1513, %v1665
        %v1758 = vadd.f32 %v1514, %v1667
        %v1759 = vadd.f32 %v1515, %v1670
        %v1760 = vadd.f32 %v1516, %v1672
        %v1761 = vadd.f32 %v1517, %v1675
        %v1762 = vadd.f32 %v1518, %v1677
        %v1763 = vadd.f32 %v1519, %v1680
        %v1764 = vadd.f32 %v1520, %v1682
        %v1765 = vadd.f32 %v1521, %v1685
        %v1766 = vadd.f32 %v1522, %v1687
        %v1767 = vadd.f32 %v1523, %v1690
        %v1768 = vadd.f32 %v1524, %v1692
        %v1769 = vadd.f32 %v1525, %v1695
        %v1770 = vadd.f32 %v1526, %v1697
        %v1771 = vadd.f32 %v1527, %v1700
        %v1772 = vadd.f32 %v1528, %v1702
        %v1773 = vadd.f32 %v1529, %v1705
        %v1774 = vadd.f32 %v1530, %v1707
        %v1775 = vadd.f32 %v1531, %v1710
        %v1776 = vadd.f32 %v1532, %v1712
        %v1777 = vlaneseq
        %v1778 = vshrl.u32 %v1777, 7
        %v1779 = vsub.s32 5, %v1778
        %v1780 = vrot.slane %v937, %v1779
        %v1781 = vmul.f32 %v886, %v1780
        %v1782 = vmul.f32 %v887, %v1780
        %v1783 = vmul.f32 %v888, %v1780
        %v1784 = vmul.f32 %v889, %v1780
        %v1785 = vmul.f32 %v890, %v1780
        %v1786 = vmul.f32 %v891, %v1780
        %v1787 = vmul.f32 %v892, %v1780
        %v1788 = vmul.f32 %v893, %v1780
        %v1789 = vmul.f32 %v894, %v1780
        %v1790 = vmul.f32 %v895, %v1780
        %v1791 = vmul.f32 %v896, %v1780
        %v1792 = vmul.f32 %v897, %v1780
        %v1793 = vmul.f32 %v898, %v1780
        %v1794 = vmul.f32 %v899, %v1780
        %v1795 = vmul.f32 %v900, %v1780
        %v1796 = vmul.f32 %v901, %v1780
        %v1797 = vmul.f32 %v902, %v1780
        %v1798 = vmul.f32 %v903, %v1780
        %v1799 = vmul.f32 %v904, %v1780
        %v1800 = vmul.f32 %v905, %v1780
        %v1801 = vmul.f32 %v906, %v1780
        %v1802 = vmul.f32 %v907, %v1780
        %v1803 = vmul.f32 %v908, %v1780
        %v1804 = vmul.f32 %v909, %v1780
        %v1805 = vmul.f32 %v910, %v1780
        %v1806 = vmul.f32 %v911, %v1780
        %v1807 = vmul.f32 %v912, %v1780
        %v1808 = vmul.f32 %v913, %v1780
        %v1809 = vmul.f32 %v914, %v1780
        %v1810 = vmul.f32 %v915, %v1780
        %v1811 = vmul.f32 %v916, %v1780
        %v1812 = vmul.f32 %v917, %v1780
        %v1813 = vmul.f32 %v918, %v1780
        %v1814 = vmul.f32 %v919, %v1780
        %v1815 = vmul.f32 %v920, %v1780
        %v1816 = vmul.f32 %v921, %v1780
        %v1817 = vmul.f32 %v922, %v1780
        %v1818 = vmul.f32 %v923, %v1780
        %v1819 = vmul.f32 %v924, %v1780
        %v1820 = vmul.f32 %v925, %v1780
        %v1821 = vmul.f32 %v926, %v1780
        %v1822 = vmul.f32 %v927, %v1780
        %v1823 = vmul.f32 %v928, %v1780
        %v1824 = vmul.f32 %v929, %v1780
        %v1825 = vmul.f32 %v930, %v1780
        %v1826 = vmul.f32 %v931, %v1780
        %v1827 = vmul.f32 %v932, %v1780
        %v1828 = vmul.f32 %v933, %v1780
        %v1877 = vrot.slane %v1781, 2
        %v1878 = vrot.slane %v1782, 2
        %v1879 = vsel %vm1320, %v1877, %v1878
        %v1880 = vrot.slane %v1783, 2
        %v1881 = vsel %vm1320, %v1878, %v1880
        %v1882 = vrot.slane %v1784, 2
        %v1883 = vrot.slane %v1785, 2
        %v1884 = vsel %vm1320, %v1882, %v1883
        %v1885 = vrot.slane %v1786, 2
        %v1886 = vsel %vm1320, %v1883, %v1885
        %v1887 = vrot.slane %v1787, 2
        %v1888 = vrot.slane %v1788, 2
        %v1889 = vsel %vm1320, %v1887, %v1888
        %v1890 = vrot.slane %v1789, 2
        %v1891 = vsel %vm1320, %v1888, %v1890
        %v1892 = vrot.slane %v1790, 2
        %v1893 = vrot.slane %v1791, 2
        %v1894 = vsel %vm1320, %v1892, %v1893
        %v1895 = vrot.slane %v1792, 2
        %v1896 = vsel %vm1320, %v1893, %v1895
        %v1897 = vrot.slane %v1793, 2
        %v1898 = vrot.slane %v1794, 2
        %v1899 = vsel %vm1320, %v1897, %v1898
        %v1900 = vrot.slane %v1795, 2
        %v1901 = vsel %vm1320, %v1898, %v1900
        %v1902 = vrot.slane %v1796, 2
        %v1903 = vrot.slane %v1797, 2
        %v1904 = vsel %vm1320, %v1902, %v1903
        %v1905 = vrot.slane %v1798, 2
        %v1906 = vsel %vm1320, %v1903, %v1905
        %v1907 = vrot.slane %v1799, 2
        %v1908 = vrot.slane %v1800, 2
        %v1909 = vsel %vm1320, %v1907, %v1908
        %v1910 = vrot.slane %v1801, 2
        %v1911 = vsel %vm1320, %v1908, %v1910
        %v1912 = vrot.slane %v1802, 2
        %v1913 = vrot.slane %v1803, 2
        %v1914 = vsel %vm1320, %v1912, %v1913
        %v1915 = vrot.slane %v1804, 2
        %v1916 = vsel %vm1320, %v1913, %v1915
        %v1917 = vrot.slane %v1805, 2
        %v1918 = vrot.slane %v1806, 2
        %v1919 = vsel %vm1320, %v1917, %v1918
        %v1920 = vrot.slane %v1807, 2
        %v1921 = vsel %vm1320, %v1918, %v1920
        %v1922 = vrot.slane %v1808, 2
        %v1923 = vrot.slane %v1809, 2
        %v1924 = vsel %vm1320, %v1922, %v1923
        %v1925 = vrot.slane %v1810, 2
        %v1926 = vsel %vm1320, %v1923, %v1925
        %v1927 = vrot.slane %v1811, 2
        %v1928 = vrot.slane %v1812, 2
        %v1929 = vsel %vm1320, %v1927, %v1928
        %v1930 = vrot.slane %v1813, 2
        %v1931 = vsel %vm1320, %v1928, %v1930
        %v1932 = vrot.slane %v1814, 2
        %v1933 = vrot.slane %v1815, 2
        %v1934 = vsel %vm1320, %v1932, %v1933
        %v1935 = vrot.slane %v1816, 2
        %v1936 = vsel %vm1320, %v1933, %v1935
        %v1937 = vrot.slane %v1817, 2
        %v1938 = vrot.slane %v1818, 2
        %v1939 = vsel %vm1320, %v1937, %v1938
        %v1940 = vrot.slane %v1819, 2
        %v1941 = vsel %vm1320, %v1938, %v1940
        %v1942 = vrot.slane %v1820, 2
        %v1943 = vrot.slane %v1821, 2
        %v1944 = vsel %vm1320, %v1942, %v1943
        %v1945 = vrot.slane %v1822, 2
        %v1946 = vsel %vm1320, %v1943, %v1945
        %v1947 = vrot.slane %v1823, 2
        %v1948 = vrot.slane %v1824, 2
        %v1949 = vsel %vm1320, %v1947, %v1948
        %v1950 = vrot.slane %v1825, 2
        %v1951 = vsel %vm1320, %v1948, %v1950
        %v1952 = vrot.slane %v1826, 2
        %v1953 = vrot.slane %v1827, 2
        %v1954 = vsel %vm1320, %v1952, %v1953
        %v1955 = vrot.slane %v1828, 2
        %v1956 = vsel %vm1320, %v1953, %v1955
        %v1989 = vadd.f32 %v1745, %v1879
        %v1990 = vadd.f32 %v1746, %v1881
        %v1991 = vadd.f32 %v1747, %v1884
        %v1992 = vadd.f32 %v1748, %v1886
        %v1993 = vadd.f32 %v1749, %v1889
        %v1994 = vadd.f32 %v1750, %v1891
        %v1995 = vadd.f32 %v1751, %v1894
        %v1996 = vadd.f32 %v1752, %v1896
        %v1997 = vadd.f32 %v1753, %v1899
        %v1998 = vadd.f32 %v1754, %v1901
        %v1999 = vadd.f32 %v1755, %v1904
        %v2000 = vadd.f32 %v1756, %v1906
        %v2001 = vadd.f32 %v1757, %v1909
        %v2002 = vadd.f32 %v1758, %v1911
        %v2003 = vadd.f32 %v1759, %v1914
        %v2004 = vadd.f32 %v1760, %v1916
        %v2005 = vadd.f32 %v1761, %v1919
        %v2006 = vadd.f32 %v1762, %v1921
        %v2007 = vadd.f32 %v1763, %v1924
        %v2008 = vadd.f32 %v1764, %v1926
        %v2009 = vadd.f32 %v1765, %v1929
        %v2010 = vadd.f32 %v1766, %v1931
        %v2011 = vadd.f32 %v1767, %v1934
        %v2012 = vadd.f32 %v1768, %v1936
        %v2013 = vadd.f32 %v1769, %v1939
        %v2014 = vadd.f32 %v1770, %v1941
        %v2015 = vadd.f32 %v1771, %v1944
        %v2016 = vadd.f32 %v1772, %v1946
        %v2017 = vadd.f32 %v1773, %v1949
        %v2018 = vadd.f32 %v1774, %v1951
        %v2019 = vadd.f32 %v1775, %v1954
        %v2020 = vadd.f32 %v1776, %v1956
        %v2021 = vlaneseq
        %v2022 = vshrl.u32 %v2021, 7
        %v2023 = vsub.s32 6, %v2022
        %v2024 = vrot.slane %v937, %v2023
        %v2025 = vmul.f32 %v889, %v2024
        %v2026 = vmul.f32 %v890, %v2024
        %v2027 = vmul.f32 %v892, %v2024
        %v2028 = vmul.f32 %v893, %v2024
        %v2029 = vmul.f32 %v895, %v2024
        %v2030 = vmul.f32 %v896, %v2024
        %v2031 = vmul.f32 %v898, %v2024
        %v2032 = vmul.f32 %v899, %v2024
        %v2033 = vmul.f32 %v901, %v2024
        %v2034 = vmul.f32 %v902, %v2024
        %v2035 = vmul.f32 %v904, %v2024
        %v2036 = vmul.f32 %v905, %v2024
        %v2037 = vmul.f32 %v907, %v2024
        %v2038 = vmul.f32 %v908, %v2024
        %v2039 = vmul.f32 %v910, %v2024
        %v2040 = vmul.f32 %v911, %v2024
        %v2041 = vmul.f32 %v913, %v2024
        %v2042 = vmul.f32 %v914, %v2024
        %v2043 = vmul.f32 %v916, %v2024
        %v2044 = vmul.f32 %v917, %v2024
        %v2045 = vmul.f32 %v919, %v2024
        %v2046 = vmul.f32 %v920, %v2024
        %v2047 = vmul.f32 %v922, %v2024
        %v2048 = vmul.f32 %v923, %v2024
        %v2049 = vmul.f32 %v925, %v2024
        %v2050 = vmul.f32 %v926, %v2024
        %v2051 = vmul.f32 %v928, %v2024
        %v2052 = vmul.f32 %v929, %v2024
        %v2053 = vmul.f32 %v931, %v2024
        %v2054 = vmul.f32 %v932, %v2024
        %v2055 = vmul.f32 %v934, %v2024
        %v2056 = vmul.f32 %v935, %v2024
        %v2057 = vadd.f32 %v1989, %v2025
        %v2058 = vadd.f32 %v1990, %v2026
        %v2059 = vadd.f32 %v1991, %v2027
        %v2060 = vadd.f32 %v1992, %v2028
        %v2061 = vadd.f32 %v1993, %v2029
        %v2062 = vadd.f32 %v1994, %v2030
        %v2063 = vadd.f32 %v1995, %v2031
        %v2064 = vadd.f32 %v1996, %v2032
        %v2065 = vadd.f32 %v1997, %v2033
        %v2066 = vadd.f32 %v1998, %v2034
        %v2067 = vadd.f32 %v1999, %v2035
        %v2068 = vadd.f32 %v2000, %v2036
        %v2069 = vadd.f32 %v2001, %v2037
        %v2070 = vadd.f32 %v2002, %v2038
        %v2071 = vadd.f32 %v2003, %v2039
        %v2072 = vadd.f32 %v2004, %v2040
        %v2073 = vadd.f32 %v2005, %v2041
        %v2074 = vadd.f32 %v2006, %v2042
        %v2075 = vadd.f32 %v2007, %v2043
        %v2076 = vadd.f32 %v2008, %v2044
        %v2077 = vadd.f32 %v2009, %v2045
        %v2078 = vadd.f32 %v2010, %v2046
        %v2079 = vadd.f32 %v2011, %v2047
        %v2080 = vadd.f32 %v2012, %v2048
        %v2081 = vadd.f32 %v2013, %v2049
        %v2082 = vadd.f32 %v2014, %v2050
        %v2083 = vadd.f32 %v2015, %v2051
        %v2084 = vadd.f32 %v2016, %v2052
        %v2085 = vadd.f32 %v2017, %v2053
        %v2086 = vadd.f32 %v2018, %v2054
        %v2087 = vadd.f32 %v2019, %v2055
        %v2088 = vadd.f32 %v2020, %v2056
        %v2089 = vlaneseq
        %v2090 = vshrl.u32 %v2089, 7
        %v2091 = vsub.s32 7, %v2090
        %v2092 = vrot.slane %v937, %v2091
        %v2093 = vmul.f32 %v889, %v2092
        %v2094 = vmul.f32 %v890, %v2092
        %v2095 = vmul.f32 %v891, %v2092
        %v2096 = vmul.f32 %v892, %v2092
        %v2097 = vmul.f32 %v893, %v2092
        %v2098 = vmul.f32 %v894, %v2092
        %v2099 = vmul.f32 %v895, %v2092
        %v2100 = vmul.f32 %v896, %v2092
        %v2101 = vmul.f32 %v897, %v2092
        %v2102 = vmul.f32 %v898, %v2092
        %v2103 = vmul.f32 %v899, %v2092
        %v2104 = vmul.f32 %v900, %v2092
        %v2105 = vmul.f32 %v901, %v2092
        %v2106 = vmul.f32 %v902, %v2092
        %v2107 = vmul.f32 %v903, %v2092
        %v2108 = vmul.f32 %v904, %v2092
        %v2109 = vmul.f32 %v905, %v2092
        %v2110 = vmul.f32 %v906, %v2092
        %v2111 = vmul.f32 %v907, %v2092
        %v2112 = vmul.f32 %v908, %v2092
        %v2113 = vmul.f32 %v909, %v2092
        %v2114 = vmul.f32 %v910, %v2092
        %v2115 = vmul.f32 %v911, %v2092
        %v2116 = vmul.f32 %v912, %v2092
        %v2117 = vmul.f32 %v913, %v2092
        %v2118 = vmul.f32 %v914, %v2092
        %v2119 = vmul.f32 %v915, %v2092
        %v2120 = vmul.f32 %v916, %v2092
        %v2121 = vmul.f32 %v917, %v2092
        %v2122 = vmul.f32 %v918, %v2092
        %v2123 = vmul.f32 %v919, %v2092
        %v2124 = vmul.f32 %v920, %v2092
        %v2125 = vmul.f32 %v921, %v2092
        %v2126 = vmul.f32 %v922, %v2092
        %v2127 = vmul.f32 %v923, %v2092
        %v2128 = vmul.f32 %v924, %v2092
        %v2129 = vmul.f32 %v925, %v2092
        %v2130 = vmul.f32 %v926, %v2092
        %v2131 = vmul.f32 %v927, %v2092
        %v2132 = vmul.f32 %v928, %v2092
        %v2133 = vmul.f32 %v929, %v2092
        %v2134 = vmul.f32 %v930, %v2092
        %v2135 = vmul.f32 %v931, %v2092
        %v2136 = vmul.f32 %v932, %v2092
        %v2137 = vmul.f32 %v933, %v2092
        %v2138 = vmul.f32 %v934, %v2092
        %v2139 = vmul.f32 %v935, %v2092
        %v2140 = vmul.f32 %v936, %v2092
        %v2189 = vrot.slane %v2093, 1
        %v2190 = vrot.slane %v2094, 1
        %v2191 = vsel %vm1075, %v2189, %v2190
        %v2192 = vrot.slane %v2095, 1
        %v2193 = vsel %vm1075, %v2190, %v2192
        %v2194 = vrot.slane %v2096, 1
        %v2195 = vrot.slane %v2097, 1
        %v2196 = vsel %vm1075, %v2194, %v2195
        %v2197 = vrot.slane %v2098, 1
        %v2198 = vsel %vm1075, %v2195, %v2197
        %v2199 = vrot.slane %v2099, 1
        %v2200 = vrot.slane %v2100, 1
        %v2201 = vsel %vm1075, %v2199, %v2200
        %v2202 = vrot.slane %v2101, 1
        %v2203 = vsel %vm1075, %v2200, %v2202
        %v2204 = vrot.slane %v2102, 1
        %v2205 = vrot.slane %v2103, 1
        %v2206 = vsel %vm1075, %v2204, %v2205
        %v2207 = vrot.slane %v2104, 1
        %v2208 = vsel %vm1075, %v2205, %v2207
        %v2209 = vrot.slane %v2105, 1
        %v2210 = vrot.slane %v2106, 1
        %v2211 = vsel %vm1075, %v2209, %v2210
        %v2212 = vrot.slane %v2107, 1
        %v2213 = vsel %vm1075, %v2210, %v2212
        %v2214 = vrot.slane %v2108, 1
        %v2215 = vrot.slane %v2109, 1
        %v2216 = vsel %vm1075, %v2214, %v2215
        %v2217 = vrot.slane %v2110, 1
        %v2218 = vsel %vm1075, %v2215, %v2217
        %v2219 = vrot.slane %v2111, 1
        %v2220 = vrot.slane %v2112, 1
        %v2221 = vsel %vm1075, %v2219, %v2220
        %v2222 = vrot.slane %v2113, 1
        %v2223 = vsel %vm1075, %v2220, %v2222
        %v2224 = vrot.slane %v2114, 1
        %v2225 = vrot.slane %v2115, 1
        %v2226 = vsel %vm1075, %v2224, %v2225
        %v2227 = vrot.slane %v2116, 1
        %v2228 = vsel %vm1075, %v2225, %v2227
        %v2229 = vrot.slane %v2117, 1
        %v2230 = vrot.slane %v2118, 1
        %v2231 = vsel %vm1075, %v2229, %v2230
        %v2232 = vrot.slane %v2119, 1
        %v2233 = vsel %vm1075, %v2230, %v2232
        %v2234 = vrot.slane %v2120, 1
        %v2235 = vrot.slane %v2121, 1
        %v2236 = vsel %vm1075, %v2234, %v2235
        %v2237 = vrot.slane %v2122, 1
        %v2238 = vsel %vm1075, %v2235, %v2237
        %v2239 = vrot.slane %v2123, 1
        %v2240 = vrot.slane %v2124, 1
        %v2241 = vsel %vm1075, %v2239, %v2240
        %v2242 = vrot.slane %v2125, 1
        %v2243 = vsel %vm1075, %v2240, %v2242
        %v2244 = vrot.slane %v2126, 1
        %v2245 = vrot.slane %v2127, 1
        %v2246 = vsel %vm1075, %v2244, %v2245
        %v2247 = vrot.slane %v2128, 1
        %v2248 = vsel %vm1075, %v2245, %v2247
        %v2249 = vrot.slane %v2129, 1
        %v2250 = vrot.slane %v2130, 1
        %v2251 = vsel %vm1075, %v2249, %v2250
        %v2252 = vrot.slane %v2131, 1
        %v2253 = vsel %vm1075, %v2250, %v2252
        %v2254 = vrot.slane %v2132, 1
        %v2255 = vrot.slane %v2133, 1
        %v2256 = vsel %vm1075, %v2254, %v2255
        %v2257 = vrot.slane %v2134, 1
        %v2258 = vsel %vm1075, %v2255, %v2257
        %v2259 = vrot.slane %v2135, 1
        %v2260 = vrot.slane %v2136, 1
        %v2261 = vsel %vm1075, %v2259, %v2260
        %v2262 = vrot.slane %v2137, 1
        %v2263 = vsel %vm1075, %v2260, %v2262
        %v2264 = vrot.slane %v2138, 1
        %v2265 = vrot.slane %v2139, 1
        %v2266 = vsel %vm1075, %v2264, %v2265
        %v2267 = vrot.slane %v2140, 1
        %v2268 = vsel %vm1075, %v2265, %v2267
        %v2301 = vadd.f32 %v2057, %v2191
        %v2302 = vadd.f32 %v2058, %v2193
        %v2303 = vadd.f32 %v2059, %v2196
        %v2304 = vadd.f32 %v2060, %v2198
        %v2305 = vadd.f32 %v2061, %v2201
        %v2306 = vadd.f32 %v2062, %v2203
        %v2307 = vadd.f32 %v2063, %v2206
        %v2308 = vadd.f32 %v2064, %v2208
        %v2309 = vadd.f32 %v2065, %v2211
        %v2310 = vadd.f32 %v2066, %v2213
        %v2311 = vadd.f32 %v2067, %v2216
        %v2312 = vadd.f32 %v2068, %v2218
        %v2313 = vadd.f32 %v2069, %v2221
        %v2314 = vadd.f32 %v2070, %v2223
        %v2315 = vadd.f32 %v2071, %v2226
        %v2316 = vadd.f32 %v2072, %v2228
        %v2317 = vadd.f32 %v2073, %v2231
        %v2318 = vadd.f32 %v2074, %v2233
        %v2319 = vadd.f32 %v2075, %v2236
        %v2320 = vadd.f32 %v2076, %v2238
        %v2321 = vadd.f32 %v2077, %v2241
        %v2322 = vadd.f32 %v2078, %v2243
        %v2323 = vadd.f32 %v2079, %v2246
        %v2324 = vadd.f32 %v2080, %v2248
        %v2325 = vadd.f32 %v2081, %v2251
        %v2326 = vadd.f32 %v2082, %v2253
        %v2327 = vadd.f32 %v2083, %v2256
        %v2328 = vadd.f32 %v2084, %v2258
        %v2329 = vadd.f32 %v2085, %v2261
        %v2330 = vadd.f32 %v2086, %v2263
        %v2331 = vadd.f32 %v2087, %v2266
        %v2332 = vadd.f32 %v2088, %v2268
        %v2333 = vlaneseq
        %v2334 = vshrl.u32 %v2333, 7
        %v2335 = vsub.s32 0, %v2334
        %v2336 = vrot.slane %v938, %v2335
        %v2337 = vmul.f32 %v889, %v2336
        %v2338 = vmul.f32 %v890, %v2336
        %v2339 = vmul.f32 %v891, %v2336
        %v2340 = vmul.f32 %v892, %v2336
        %v2341 = vmul.f32 %v893, %v2336
        %v2342 = vmul.f32 %v894, %v2336
        %v2343 = vmul.f32 %v895, %v2336
        %v2344 = vmul.f32 %v896, %v2336
        %v2345 = vmul.f32 %v897, %v2336
        %v2346 = vmul.f32 %v898, %v2336
        %v2347 = vmul.f32 %v899, %v2336
        %v2348 = vmul.f32 %v900, %v2336
        %v2349 = vmul.f32 %v901, %v2336
        %v2350 = vmul.f32 %v902, %v2336
        %v2351 = vmul.f32 %v903, %v2336
        %v2352 = vmul.f32 %v904, %v2336
        %v2353 = vmul.f32 %v905, %v2336
        %v2354 = vmul.f32 %v906, %v2336
        %v2355 = vmul.f32 %v907, %v2336
        %v2356 = vmul.f32 %v908, %v2336
        %v2357 = vmul.f32 %v909, %v2336
        %v2358 = vmul.f32 %v910, %v2336
        %v2359 = vmul.f32 %v911, %v2336
        %v2360 = vmul.f32 %v912, %v2336
        %v2361 = vmul.f32 %v913, %v2336
        %v2362 = vmul.f32 %v914, %v2336
        %v2363 = vmul.f32 %v915, %v2336
        %v2364 = vmul.f32 %v916, %v2336
        %v2365 = vmul.f32 %v917, %v2336
        %v2366 = vmul.f32 %v918, %v2336
        %v2367 = vmul.f32 %v919, %v2336
        %v2368 = vmul.f32 %v920, %v2336
        %v2369 = vmul.f32 %v921, %v2336
        %v2370 = vmul.f32 %v922, %v2336
        %v2371 = vmul.f32 %v923, %v2336
        %v2372 = vmul.f32 %v924, %v2336
        %v2373 = vmul.f32 %v925, %v2336
        %v2374 = vmul.f32 %v926, %v2336
        %v2375 = vmul.f32 %v927, %v2336
        %v2376 = vmul.f32 %v928, %v2336
        %v2377 = vmul.f32 %v929, %v2336
        %v2378 = vmul.f32 %v930, %v2336
        %v2379 = vmul.f32 %v931, %v2336
        %v2380 = vmul.f32 %v932, %v2336
        %v2381 = vmul.f32 %v933, %v2336
        %v2382 = vmul.f32 %v934, %v2336
        %v2383 = vmul.f32 %v935, %v2336
        %v2384 = vmul.f32 %v936, %v2336
        %v2433 = vrot.slane %v2337, 2
        %v2434 = vrot.slane %v2338, 2
        %v2435 = vsel %vm1320, %v2433, %v2434
        %v2436 = vrot.slane %v2339, 2
        %v2437 = vsel %vm1320, %v2434, %v2436
        %v2438 = vrot.slane %v2340, 2
        %v2439 = vrot.slane %v2341, 2
        %v2440 = vsel %vm1320, %v2438, %v2439
        %v2441 = vrot.slane %v2342, 2
        %v2442 = vsel %vm1320, %v2439, %v2441
        %v2443 = vrot.slane %v2343, 2
        %v2444 = vrot.slane %v2344, 2
        %v2445 = vsel %vm1320, %v2443, %v2444
        %v2446 = vrot.slane %v2345, 2
        %v2447 = vsel %vm1320, %v2444, %v2446
        %v2448 = vrot.slane %v2346, 2
        %v2449 = vrot.slane %v2347, 2
        %v2450 = vsel %vm1320, %v2448, %v2449
        %v2451 = vrot.slane %v2348, 2
        %v2452 = vsel %vm1320, %v2449, %v2451
        %v2453 = vrot.slane %v2349, 2
        %v2454 = vrot.slane %v2350, 2
        %v2455 = vsel %vm1320, %v2453, %v2454
        %v2456 = vrot.slane %v2351, 2
        %v2457 = vsel %vm1320, %v2454, %v2456
        %v2458 = vrot.slane %v2352, 2
        %v2459 = vrot.slane %v2353, 2
        %v2460 = vsel %vm1320, %v2458, %v2459
        %v2461 = vrot.slane %v2354, 2
        %v2462 = vsel %vm1320, %v2459, %v2461
        %v2463 = vrot.slane %v2355, 2
        %v2464 = vrot.slane %v2356, 2
        %v2465 = vsel %vm1320, %v2463, %v2464
        %v2466 = vrot.slane %v2357, 2
        %v2467 = vsel %vm1320, %v2464, %v2466
        %v2468 = vrot.slane %v2358, 2
        %v2469 = vrot.slane %v2359, 2
        %v2470 = vsel %vm1320, %v2468, %v2469
        %v2471 = vrot.slane %v2360, 2
        %v2472 = vsel %vm1320, %v2469, %v2471
        %v2473 = vrot.slane %v2361, 2
        %v2474 = vrot.slane %v2362, 2
        %v2475 = vsel %vm1320, %v2473, %v2474
        %v2476 = vrot.slane %v2363, 2
        %v2477 = vsel %vm1320, %v2474, %v2476
        %v2478 = vrot.slane %v2364, 2
        %v2479 = vrot.slane %v2365, 2
        %v2480 = vsel %vm1320, %v2478, %v2479
        %v2481 = vrot.slane %v2366, 2
        %v2482 = vsel %vm1320, %v2479, %v2481
        %v2483 = vrot.slane %v2367, 2
        %v2484 = vrot.slane %v2368, 2
        %v2485 = vsel %vm1320, %v2483, %v2484
        %v2486 = vrot.slane %v2369, 2
        %v2487 = vsel %vm1320, %v2484, %v2486
        %v2488 = vrot.slane %v2370, 2
        %v2489 = vrot.slane %v2371, 2
        %v2490 = vsel %vm1320, %v2488, %v2489
        %v2491 = vrot.slane %v2372, 2
        %v2492 = vsel %vm1320, %v2489, %v2491
        %v2493 = vrot.slane %v2373, 2
        %v2494 = vrot.slane %v2374, 2
        %v2495 = vsel %vm1320, %v2493, %v2494
        %v2496 = vrot.slane %v2375, 2
        %v2497 = vsel %vm1320, %v2494, %v2496
        %v2498 = vrot.slane %v2376, 2
        %v2499 = vrot.slane %v2377, 2
        %v2500 = vsel %vm1320, %v2498, %v2499
        %v2501 = vrot.slane %v2378, 2
        %v2502 = vsel %vm1320, %v2499, %v2501
        %v2503 = vrot.slane %v2379, 2
        %v2504 = vrot.slane %v2380, 2
        %v2505 = vsel %vm1320, %v2503, %v2504
        %v2506 = vrot.slane %v2381, 2
        %v2507 = vsel %vm1320, %v2504, %v2506
        %v2508 = vrot.slane %v2382, 2
        %v2509 = vrot.slane %v2383, 2
        %v2510 = vsel %vm1320, %v2508, %v2509
        %v2511 = vrot.slane %v2384, 2
        %v2512 = vsel %vm1320, %v2509, %v2511
        %v2545 = vadd.f32 %v2301, %v2435
        %v2546 = vadd.f32 %v2302, %v2437
        %v2547 = vadd.f32 %v2303, %v2440
        %v2548 = vadd.f32 %v2304, %v2442
        %v2549 = vadd.f32 %v2305, %v2445
        %v2550 = vadd.f32 %v2306, %v2447
        %v2551 = vadd.f32 %v2307, %v2450
        %v2552 = vadd.f32 %v2308, %v2452
        %v2553 = vadd.f32 %v2309, %v2455
        %v2554 = vadd.f32 %v2310, %v2457
        %v2555 = vadd.f32 %v2311, %v2460
        %v2556 = vadd.f32 %v2312, %v2462
        %v2557 = vadd.f32 %v2313, %v2465
        %v2558 = vadd.f32 %v2314, %v2467
        %v2559 = vadd.f32 %v2315, %v2470
        %v2560 = vadd.f32 %v2316, %v2472
        %v2561 = vadd.f32 %v2317, %v2475
        %v2562 = vadd.f32 %v2318, %v2477
        %v2563 = vadd.f32 %v2319, %v2480
        %v2564 = vadd.f32 %v2320, %v2482
        %v2565 = vadd.f32 %v2321, %v2485
        %v2566 = vadd.f32 %v2322, %v2487
        %v2567 = vadd.f32 %v2323, %v2490
        %v2568 = vadd.f32 %v2324, %v2492
        %v2569 = vadd.f32 %v2325, %v2495
        %v2570 = vadd.f32 %v2326, %v2497
        %v2571 = vadd.f32 %v2327, %v2500
        %v2572 = vadd.f32 %v2328, %v2502
        %v2573 = vadd.f32 %v2329, %v2505
        %v2574 = vadd.f32 %v2330, %v2507
        %v2575 = vadd.f32 %v2331, %v2510
        %v2576 = vadd.f32 %v2332, %v2512
        %v2577 = vld [vmem:[%s4] sm:$0x1]
        %v2579 = vlaneseq
        %v2580 = vshrl.u32 %v2579, 7
        %v2581 = vsub.s32 0, %v2580
        %v2582 = vrot.slane %v2577, %v2581
        %v2584 = vadd.f32 %v2545, %v2582
        %v2585 = vadd.f32 %v2546, %v2582
        %v2586 = vadd.f32 %v2547, %v2582
        %v2587 = vadd.f32 %v2548, %v2582
        %v2588 = vadd.f32 %v2549, %v2582
        %v2589 = vadd.f32 %v2550, %v2582
        %v2590 = vadd.f32 %v2551, %v2582
        %v2591 = vadd.f32 %v2552, %v2582
        %v2592 = vadd.f32 %v2553, %v2582
        %v2593 = vadd.f32 %v2554, %v2582
        %v2594 = vadd.f32 %v2555, %v2582
        %v2595 = vadd.f32 %v2556, %v2582
        %v2596 = vadd.f32 %v2557, %v2582
        %v2597 = vadd.f32 %v2558, %v2582
        %v2598 = vadd.f32 %v2559, %v2582
        %v2599 = vadd.f32 %v2560, %v2582
        %v2600 = vadd.f32 %v2561, %v2582
        %v2601 = vadd.f32 %v2562, %v2582
        %v2602 = vadd.f32 %v2563, %v2582
        %v2603 = vadd.f32 %v2564, %v2582
        %v2604 = vadd.f32 %v2565, %v2582
        %v2605 = vadd.f32 %v2566, %v2582
        %v2606 = vadd.f32 %v2567, %v2582
        %v2607 = vadd.f32 %v2568, %v2582
        %v2608 = vadd.f32 %v2569, %v2582
        %v2609 = vadd.f32 %v2570, %v2582
        %v2610 = vadd.f32 %v2571, %v2582
        %v2611 = vadd.f32 %v2572, %v2582
        %v2612 = vadd.f32 %v2573, %v2582
        %v2613 = vadd.f32 %v2574, %v2582
        %v2614 = vadd.f32 %v2575, %v2582
        %v2615 = vadd.f32 %v2576, %v2582
        %v2616 = vmax.f32 %v2584, 0.0
        %v2617 = vmax.f32 %v2585, 0.0
        %v2618 = vmax.f32 %v2586, 0.0
        %v2619 = vmax.f32 %v2587, 0.0
        %v2620 = vmax.f32 %v2588, 0.0
        %v2621 = vmax.f32 %v2589, 0.0
        %v2622 = vmax.f32 %v2590, 0.0
        %v2623 = vmax.f32 %v2591, 0.0
        %v2624 = vmax.f32 %v2592, 0.0
        %v2625 = vmax.f32 %v2593, 0.0
        %v2626 = vmax.f32 %v2594, 0.0
        %v2627 = vmax.f32 %v2595, 0.0
        %v2628 = vmax.f32 %v2596, 0.0
        %v2629 = vmax.f32 %v2597, 0.0
        %v2630 = vmax.f32 %v2598, 0.0
        %v2631 = vmax.f32 %v2599, 0.0
        %v2632 = vmax.f32 %v2600, 0.0
        %v2633 = vmax.f32 %v2601, 0.0
        %v2634 = vmax.f32 %v2602, 0.0
        %v2635 = vmax.f32 %v2603, 0.0
        %v2636 = vmax.f32 %v2604, 0.0
        %v2637 = vmax.f32 %v2605, 0.0
        %v2638 = vmax.f32 %v2606, 0.0
        %v2639 = vmax.f32 %v2607, 0.0
        %v2640 = vmax.f32 %v2608, 0.0
        %v2641 = vmax.f32 %v2609, 0.0
        %v2642 = vmax.f32 %v2610, 0.0
        %v2643 = vmax.f32 %v2611, 0.0
        %v2644 = vmax.f32 %v2612, 0.0
        %v2645 = vmax.f32 %v2613, 0.0
        %v2646 = vmax.f32 %v2614, 0.0
        %v2647 = vmax.f32 %v2615, 0.0
        %v2648 = vmin.f32 %v2616, 6.0
        %v2649 = vmin.f32 %v2617, 6.0
        %v2650 = vmin.f32 %v2618, 6.0
        %v2651 = vmin.f32 %v2619, 6.0
        %v2652 = vmin.f32 %v2620, 6.0
        %v2653 = vmin.f32 %v2621, 6.0
        %v2654 = vmin.f32 %v2622, 6.0
        %v2655 = vmin.f32 %v2623, 6.0
        %v2656 = vmin.f32 %v2624, 6.0
        %v2657 = vmin.f32 %v2625, 6.0
        %v2658 = vmin.f32 %v2626, 6.0
        %v2659 = vmin.f32 %v2627, 6.0
        %v2660 = vmin.f32 %v2628, 6.0
        %v2661 = vmin.f32 %v2629, 6.0
        %v2662 = vmin.f32 %v2630, 6.0
        %v2663 = vmin.f32 %v2631, 6.0
        %v2664 = vmin.f32 %v2632, 6.0
        %v2665 = vmin.f32 %v2633, 6.0
        %v2666 = vmin.f32 %v2634, 6.0
        %v2667 = vmin.f32 %v2635, 6.0
        %v2668 = vmin.f32 %v2636, 6.0
        %v2669 = vmin.f32 %v2637, 6.0
        %v2670 = vmin.f32 %v2638, 6.0
        %v2671 = vmin.f32 %v2639, 6.0
        %v2672 = vmin.f32 %v2640, 6.0
        %v2673 = vmin.f32 %v2641, 6.0
        %v2674 = vmin.f32 %v2642, 6.0
        %v2675 = vmin.f32 %v2643, 6.0
        %v2676 = vmin.f32 %v2644, 6.0
        %v2677 = vmin.f32 %v2645, 6.0
        %v2678 = vmin.f32 %v2646, 6.0
        %v2679 = vmin.f32 %v2647, 6.0
        %v2680 = vld [vmem:[#allocation8] sm:$0xff]
        %v2681 = vld [vmem:[#allocation8 + $0x8] sm:$0xff]
        %v2682 = vld [vmem:[#allocation8 + $0x10] sm:$0xff]
        %v2683 = vld [vmem:[#allocation8 + $0x18] sm:$0xff]
        %v2684 = vld [vmem:[#allocation8 + $0x20] sm:$0xff]
        %v2685 = vld [vmem:[#allocation8 + $0x28] sm:$0xff]
        %v2686 = vld [vmem:[#allocation8 + $0x30] sm:$0xff]
        %v2687 = vld [vmem:[#allocation8 + $0x38] sm:$0xff]
        %v2688 = vld [vmem:[#allocation8 + $0x40] sm:$0xff]
        %v2689 = vld [vmem:[#allocation8 + $0x48] sm:$0xff]
        %v2690 = vld [vmem:[#allocation8 + $0x50] sm:$0xff]
        %v2691 = vld [vmem:[#allocation8 + $0x58] sm:$0xff]
        %v2692 = vld [vmem:[#allocation8 + $0x60] sm:$0xff]
        %v2693 = vld [vmem:[#allocation8 + $0x68] sm:$0xff]
        %v2694 = vld [vmem:[#allocation8 + $0x70] sm:$0xff]
        %v2695 = vld [vmem:[#allocation8 + $0x78] sm:$0xff]
        %v2696 = vld [vmem:[%s6] sm:$0x1]
        %v2698 = vlaneseq
        %v2699 = vshrl.u32 %v2698, 7
        %v2700 = vsub.s32 0, %v2699
        %v2701 = vrot.slane %v2696, %v2700
        %2703 = vmatprep.subr.mxu0 0.0
        %2704 = vmatpush1.msra.mxu0 %v2680
        %2705 = vmatprep.subr.mxu0 0.0
        %2706 = vmatpush1.msra.mxu0 %v2681
        %2707 = vmatprep.subr.mxu0 0.0
        %2708 = vmatpush1.msra.mxu0 %v2682
        %2709 = vmatprep.subr.mxu0 0.0
        %2710 = vmatpush1.msra.mxu0 %v2683
        %2711 = vmatprep.subr.mxu0 0.0
        %2712 = vmatpush1.msra.mxu0 %v2684
        %2713 = vmatprep.subr.mxu0 0.0
        %2714 = vmatpush1.msra.mxu0 %v2685
        %2715 = vmatprep.subr.mxu0 0.0
        %2716 = vmatpush1.msra.mxu0 %v2686
        %2717 = vmatprep.subr.mxu0 0.0
        %2718 = vmatpush1.msra.mxu0 %v2687
        %2719 = vmatprep.subr.mxu0 0.0
        %2720 = vmatpush1.msra.mxu0 %v2688
        %2721 = vmatprep.subr.mxu0 0.0
        %2722 = vmatpush1.msra.mxu0 %v2689
        %2723 = vmatprep.subr.mxu0 0.0
        %2724 = vmatpush1.msra.mxu0 %v2690
        %2725 = vmatprep.subr.mxu0 0.0
        %2726 = vmatpush1.msra.mxu0 %v2691
        %2727 = vmatprep.subr.mxu0 0.0
        %2728 = vmatpush1.msra.mxu0 %v2692
        %2729 = vmatprep.subr.mxu0 0.0
        %2730 = vmatpush1.msra.mxu0 %v2693
        %2731 = vmatprep.subr.mxu0 0.0
        %2732 = vmatpush1.msra.mxu0 %v2694
        %2733 = vmatprep.subr.mxu0 0.0
        %2734 = vmatpush1.msra.mxu0 %v2695
        %2735 = vmatprep.subr.mxu0 0.0
        %2736 = vmatpush1.msra.mxu0 0.0
        %2737 = vmatprep.subr.mxu0 0.0
        %2738 = vmatpush1.msra.mxu0 0.0
        %2739 = vmatprep.subr.mxu0 0.0
        %2740 = vmatpush1.msra.mxu0 0.0
        %2741 = vmatprep.subr.mxu0 0.0
        %2742 = vmatpush1.msra.mxu0 0.0
        %2743 = vmatprep.subr.mxu0 0.0
        %2744 = vmatpush1.msra.mxu0 0.0
        %2745 = vmatprep.subr.mxu0 0.0
        %2746 = vmatpush1.msra.mxu0 0.0
        %2747 = vmatprep.subr.mxu0 0.0
        %2748 = vmatpush1.msra.mxu0 0.0
        %2749 = vmatprep.subr.mxu0 0.0
        %2750 = vmatpush1.msra.mxu0 0.0
        %2751 = vmatprep.subr.mxu0 0.0
        %2752 = vmatpush1.msra.mxu0 0.0
        %2753 = vmatprep.subr.mxu0 0.0
        %2754 = vmatpush1.msra.mxu0 0.0
        %2755 = vmatprep.subr.mxu0 0.0
        %2756 = vmatpush1.msra.mxu0 0.0
        %2757 = vmatprep.subr.mxu0 0.0
        %2758 = vmatpush1.msra.mxu0 0.0
        %2759 = vmatprep.subr.mxu0 0.0
        %2760 = vmatpush1.msra.mxu0 0.0
        %2761 = vmatprep.subr.mxu0 0.0
        %2762 = vmatpush1.msra.mxu0 0.0
        %2763 = vmatprep.subr.mxu0 0.0
        %2764 = vmatpush1.msra.mxu0 0.0
        %2765 = vmatprep.subr.mxu0 0.0
        %2766 = vmatpush1.msra.mxu0 0.0
        %2767 = vmatprep.mubr.f32.mxu0 0.0
        %2768 = vmatmul.mubr.f32.gmra.mrb[0].mxu0 %v2648
        %v2769 = vpop.f32.mrb[0].mxu0
        %v2770 = vadd.f32 %v2701, %v2769
        %v2771 = vpop.f32.mrb[0].mxu0
        %2772 = vmatprep.mubr.f32.mxu0 0.0
        %2773 = vmatmul.mubr.f32.gmra.mrb[0].mxu0 %v2649
        %v2774 = vpop.f32.mrb[0].mxu0
        %v2775 = vadd.f32 %v2701, %v2774
        %v2776 = vpop.f32.mrb[0].mxu0
        %2777 = vmatprep.mubr.f32.mxu0 0.0
        %2778 = vmatmul.mubr.f32.gmra.mrb[0].mxu0 %v2650
        %v2779 = vpop.f32.mrb[0].mxu0
        %v2780 = vadd.f32 %v2701, %v2779
        %v2781 = vpop.f32.mrb[0].mxu0
        %2782 = vmatprep.mubr.f32.mxu0 0.0
        %2783 = vmatmul.mubr.f32.gmra.mrb[0].mxu0 %v2651
        %v2784 = vpop.f32.mrb[0].mxu0
        %v2785 = vadd.f32 %v2701, %v2784
        %v2786 = vpop.f32.mrb[0].mxu0
        %2787 = vmatprep.mubr.f32.mxu0 0.0
        %2788 = vmatmul.mubr.f32.gmra.mrb[0].mxu0 %v2652
        %v2789 = vpop.f32.mrb[0].mxu0
        %v2790 = vadd.f32 %v2701, %v2789
        %v2791 = vpop.f32.mrb[0].mxu0
        %2792 = vmatprep.mubr.f32.mxu0 0.0
        %2793 = vmatmul.mubr.f32.gmra.mrb[0].mxu0 %v2653
        %v2794 = vpop.f32.mrb[0].mxu0
        %v2795 = vadd.f32 %v2701, %v2794
        %v2796 = vpop.f32.mrb[0].mxu0
        %2797 = vmatprep.mubr.f32.mxu0 0.0
        %2798 = vmatmul.mubr.f32.gmra.mrb[0].mxu0 %v2654
        %v2799 = vpop.f32.mrb[0].mxu0
        %v2800 = vadd.f32 %v2701, %v2799
        %v2801 = vpop.f32.mrb[0].mxu0
        %2802 = vmatprep.mubr.f32.mxu0 0.0
        %2803 = vmatmul.mubr.f32.gmra.mrb[0].mxu0 %v2655
        %v2804 = vpop.f32.mrb[0].mxu0
        %v2805 = vadd.f32 %v2701, %v2804
        %v2806 = vpop.f32.mrb[0].mxu0
        %2807 = vmatprep.mubr.f32.mxu0 0.0
        %2808 = vmatmul.mubr.f32.gmra.mrb[0].mxu0 %v2656
        %v2809 = vpop.f32.mrb[0].mxu0
        %v2810 = vadd.f32 %v2701, %v2809
        %v2811 = vpop.f32.mrb[0].mxu0
        %2812 = vmatprep.mubr.f32.mxu0 0.0
        %2813 = vmatmul.mubr.f32.gmra.mrb[0].mxu0 %v2657
        %v2814 = vpop.f32.mrb[0].mxu0
        %v2815 = vadd.f32 %v2701, %v2814
        %v2816 = vpop.f32.mrb[0].mxu0
        %2817 = vmatprep.mubr.f32.mxu0 0.0
        %2818 = vmatmul.mubr.f32.gmra.mrb[0].mxu0 %v2658
        %v2819 = vpop.f32.mrb[0].mxu0
        %v2820 = vadd.f32 %v2701, %v2819
        %v2821 = vpop.f32.mrb[0].mxu0
        %2822 = vmatprep.mubr.f32.mxu0 0.0
        %2823 = vmatmul.mubr.f32.gmra.mrb[0].mxu0 %v2659
        %v2824 = vpop.f32.mrb[0].mxu0
        %v2825 = vadd.f32 %v2701, %v2824
        %v2826 = vpop.f32.mrb[0].mxu0
        %2827 = vmatprep.mubr.f32.mxu0 0.0
        %2828 = vmatmul.mubr.f32.gmra.mrb[0].mxu0 %v2660
        %v2829 = vpop.f32.mrb[0].mxu0
        %v2830 = vadd.f32 %v2701, %v2829
        %v2831 = vpop.f32.mrb[0].mxu0
        %2832 = vmatprep.mubr.f32.mxu0 0.0
        %2833 = vmatmul.mubr.f32.gmra.mrb[0].mxu0 %v2661
        %v2834 = vpop.f32.mrb[0].mxu0
        %v2835 = vadd.f32 %v2701, %v2834
        %v2836 = vpop.f32.mrb[0].mxu0
        %2837 = vmatprep.mubr.f32.mxu0 0.0
        %2838 = vmatmul.mubr.f32.gmra.mrb[0].mxu0 %v2662
        %v2839 = vpop.f32.mrb[0].mxu0
        %v2840 = vadd.f32 %v2701, %v2839
        %v2841 = vpop.f32.mrb[0].mxu0
        %2842 = vmatprep.mubr.f32.mxu0 0.0
        %2843 = vmatmul.mubr.f32.gmra.mrb[0].mxu0 %v2663
        %v2844 = vpop.f32.mrb[0].mxu0
        %v2845 = vadd.f32 %v2701, %v2844
        %v2846 = vpop.f32.mrb[0].mxu0
        %2847 = vmatprep.mubr.f32.mxu0 0.0
        %2848 = vmatmul.mubr.f32.gmra.mrb[0].mxu0 %v2664
        %v2849 = vpop.f32.mrb[0].mxu0
        %v2850 = vadd.f32 %v2701, %v2849
        %v2851 = vpop.f32.mrb[0].mxu0
        %2852 = vmatprep.mubr.f32.mxu0 0.0
        %2853 = vmatmul.mubr.f32.gmra.mrb[0].mxu0 %v2665
        %v2854 = vpop.f32.mrb[0].mxu0
        %v2855 = vadd.f32 %v2701, %v2854
        %v2856 = vpop.f32.mrb[0].mxu0
        %2857 = vmatprep.mubr.f32.mxu0 0.0
        %2858 = vmatmul.mubr.f32.gmra.mrb[0].mxu0 %v2666
        %v2859 = vpop.f32.mrb[0].mxu0
        %v2860 = vadd.f32 %v2701, %v2859
        %v2861 = vpop.f32.mrb[0].mxu0
        %2862 = vmatprep.mubr.f32.mxu0 0.0
        %2863 = vmatmul.mubr.f32.gmra.mrb[0].mxu0 %v2667
        %v2864 = vpop.f32.mrb[0].mxu0
        %v2865 = vadd.f32 %v2701, %v2864
        %v2866 = vpop.f32.mrb[0].mxu0
        %2867 = vmatprep.mubr.f32.mxu0 0.0
        %2868 = vmatmul.mubr.f32.gmra.mrb[0].mxu0 %v2668
        %v2869 = vpop.f32.mrb[0].mxu0
        %v2870 = vadd.f32 %v2701, %v2869
        %v2871 = vpop.f32.mrb[0].mxu0
        %2872 = vmatprep.mubr.f32.mxu0 0.0
        %2873 = vmatmul.mubr.f32.gmra.mrb[0].mxu0 %v2669
        %v2874 = vpop.f32.mrb[0].mxu0
        %v2875 = vadd.f32 %v2701, %v2874
        %v2876 = vpop.f32.mrb[0].mxu0
        %2877 = vmatprep.mubr.f32.mxu0 0.0
        %2878 = vmatmul.mubr.f32.gmra.mrb[0].mxu0 %v2670
        %v2879 = vpop.f32.mrb[0].mxu0
        %v2880 = vadd.f32 %v2701, %v2879
        %v2881 = vpop.f32.mrb[0].mxu0
        %2882 = vmatprep.mubr.f32.mxu0 0.0
        %2883 = vmatmul.mubr.f32.gmra.mrb[0].mxu0 %v2671
        %v2884 = vpop.f32.mrb[0].mxu0
        %v2885 = vadd.f32 %v2701, %v2884
        %v2886 = vpop.f32.mrb[0].mxu0
        %2887 = vmatprep.mubr.f32.mxu0 0.0
        %2888 = vmatmul.mubr.f32.gmra.mrb[0].mxu0 %v2672
        %v2889 = vpop.f32.mrb[0].mxu0
        %v2890 = vadd.f32 %v2701, %v2889
        %v2891 = vpop.f32.mrb[0].mxu0
        %2892 = vmatprep.mubr.f32.mxu0 0.0
        %2893 = vmatmul.mubr.f32.gmra.mrb[0].mxu0 %v2673
        %v2894 = vpop.f32.mrb[0].mxu0
        %v2895 = vadd.f32 %v2701, %v2894
        %v2896 = vpop.f32.mrb[0].mxu0
        %2897 = vmatprep.mubr.f32.mxu0 0.0
        %2898 = vmatmul.mubr.f32.gmra.mrb[0].mxu0 %v2674
        %v2899 = vpop.f32.mrb[0].mxu0
        %v2900 = vadd.f32 %v2701, %v2899
        %v2901 = vpop.f32.mrb[0].mxu0
        %2902 = vmatprep.mubr.f32.mxu0 0.0
        %2903 = vmatmul.mubr.f32.gmra.mrb[0].mxu0 %v2675
        %v2904 = vpop.f32.mrb[0].mxu0
        %v2905 = vadd.f32 %v2701, %v2904
        %v2906 = vpop.f32.mrb[0].mxu0
        %2907 = vmatprep.mubr.f32.mxu0 0.0
        %2908 = vmatmul.mubr.f32.gmra.mrb[0].mxu0 %v2676
        %v2909 = vpop.f32.mrb[0].mxu0
        %v2910 = vadd.f32 %v2701, %v2909
        %v2911 = vpop.f32.mrb[0].mxu0
        %2912 = vmatprep.mubr.f32.mxu0 0.0
        %2913 = vmatmul.mubr.f32.gmra.mrb[0].mxu0 %v2677
        %v2914 = vpop.f32.mrb[0].mxu0
        %v2915 = vadd.f32 %v2701, %v2914
        %v2916 = vpop.f32.mrb[0].mxu0
        %2917 = vmatprep.mubr.f32.mxu0 0.0
        %2918 = vmatmul.mubr.f32.gmra.mrb[0].mxu0 %v2678
        %v2919 = vpop.f32.mrb[0].mxu0
        %v2920 = vadd.f32 %v2701, %v2919
        %v2921 = vpop.f32.mrb[0].mxu0
        %2922 = vmatprep.mubr.f32.mxu0 0.0
        %2923 = vmatmul.mubr.f32.gmra.mrb[0].mxu0 %v2679
        %v2924 = vpop.f32.mrb[0].mxu0
        %v2925 = vadd.f32 %v2701, %v2924
        %v2926 = vpop.f32.mrb[0].mxu0
        %2927 = vdwg.mxu0
        %v2976 = vrot.slane %v344, 1
        %v2977 = vrot.slane %v345, 1
        %v2978 = vsel %vm1075, %v2976, %v2977
        %v2979 = vrot.slane %v346, 1
        %v2980 = vsel %vm1075, %v2977, %v2979
        %v2981 = vrot.slane %v347, 1
        %v2982 = vrot.slane %v348, 1
        %v2983 = vsel %vm1075, %v2981, %v2982
        %v2984 = vrot.slane %v349, 1
        %v2985 = vsel %vm1075, %v2982, %v2984
        %v2986 = vrot.slane %v350, 1
        %v2987 = vrot.slane %v351, 1
        %v2988 = vsel %vm1075, %v2986, %v2987
        %v2989 = vrot.slane %v352, 1
        %v2990 = vsel %vm1075, %v2987, %v2989
        %v2991 = vrot.slane %v353, 1
        %v2992 = vrot.slane %v354, 1
        %v2993 = vsel %vm1075, %v2991, %v2992
        %v2994 = vrot.slane %v355, 1
        %v2995 = vsel %vm1075, %v2992, %v2994
        %v2996 = vrot.slane %v356, 1
        %v2997 = vrot.slane %v357, 1
        %v2998 = vsel %vm1075, %v2996, %v2997
        %v2999 = vrot.slane %v358, 1
        %v3000 = vsel %vm1075, %v2997, %v2999
        %v3001 = vrot.slane %v359, 1
        %v3002 = vrot.slane %v360, 1
        %v3003 = vsel %vm1075, %v3001, %v3002
        %v3004 = vrot.slane %v361, 1
        %v3005 = vsel %vm1075, %v3002, %v3004
        %v3006 = vrot.slane %v362, 1
        %v3007 = vrot.slane %v363, 1
        %v3008 = vsel %vm1075, %v3006, %v3007
        %v3009 = vrot.slane %v364, 1
        %v3010 = vsel %vm1075, %v3007, %v3009
        %v3011 = vrot.slane %v365, 1
        %v3012 = vrot.slane %v366, 1
        %v3013 = vsel %vm1075, %v3011, %v3012
        %v3014 = vrot.slane %v367, 1
        %v3015 = vsel %vm1075, %v3012, %v3014
        %v3016 = vrot.slane %v368, 1
        %v3017 = vrot.slane %v369, 1
        %v3018 = vsel %vm1075, %v3016, %v3017
        %v3019 = vrot.slane %v370, 1
        %v3020 = vsel %vm1075, %v3017, %v3019
        %v3021 = vrot.slane %v371, 1
        %v3022 = vrot.slane %v372, 1
        %v3023 = vsel %vm1075, %v3021, %v3022
        %v3024 = vrot.slane %v373, 1
        %v3025 = vsel %vm1075, %v3022, %v3024
        %v3026 = vrot.slane %v374, 1
        %v3027 = vrot.slane %v375, 1
        %v3028 = vsel %vm1075, %v3026, %v3027
        %v3029 = vrot.slane %v376, 1
        %v3030 = vsel %vm1075, %v3027, %v3029
        %v3031 = vrot.slane %v377, 1
        %v3032 = vrot.slane %v378, 1
        %v3033 = vsel %vm1075, %v3031, %v3032
        %v3034 = vrot.slane %v379, 1
        %v3035 = vsel %vm1075, %v3032, %v3034
        %v3036 = vrot.slane %v380, 1
        %v3037 = vrot.slane %v381, 1
        %v3038 = vsel %vm1075, %v3036, %v3037
        %v3039 = vrot.slane %v382, 1
        %v3040 = vsel %vm1075, %v3037, %v3039
        %v3041 = vrot.slane %v383, 1
        %v3042 = vrot.slane %v384, 1
        %v3043 = vsel %vm1075, %v3041, %v3042
        %v3044 = vrot.slane %v385, 1
        %v3045 = vsel %vm1075, %v3042, %v3044
        %v3046 = vrot.slane %v386, 1
        %v3047 = vrot.slane %v387, 1
        %v3048 = vsel %vm1075, %v3046, %v3047
        %v3049 = vrot.slane %v388, 1
        %v3050 = vsel %vm1075, %v3047, %v3049
        %v3051 = vrot.slane %v389, 1
        %v3052 = vrot.slane %v390, 1
        %v3053 = vsel %vm1075, %v3051, %v3052
        %v3054 = vrot.slane %v391, 1
        %v3055 = vsel %vm1075, %v3052, %v3054
        %v3088 = vadd.f32 %v2770, %v2978
        %v3089 = vadd.f32 %v2775, %v2980
        %v3090 = vadd.f32 %v2780, %v2983
        %v3091 = vadd.f32 %v2785, %v2985
        %v3092 = vadd.f32 %v2790, %v2988
        %v3093 = vadd.f32 %v2795, %v2990
        %v3094 = vadd.f32 %v2800, %v2993
        %v3095 = vadd.f32 %v2805, %v2995
        %v3096 = vadd.f32 %v2810, %v2998
        %v3097 = vadd.f32 %v2815, %v3000
        %v3098 = vadd.f32 %v2820, %v3003
        %v3099 = vadd.f32 %v2825, %v3005
        %v3100 = vadd.f32 %v2830, %v3008
        %v3101 = vadd.f32 %v2835, %v3010
        %v3102 = vadd.f32 %v2840, %v3013
        %v3103 = vadd.f32 %v2845, %v3015
        %v3104 = vadd.f32 %v2850, %v3018
        %v3105 = vadd.f32 %v2855, %v3020
        %v3106 = vadd.f32 %v2860, %v3023
        %v3107 = vadd.f32 %v2865, %v3025
        %v3108 = vadd.f32 %v2870, %v3028
        %v3109 = vadd.f32 %v2875, %v3030
        %v3110 = vadd.f32 %v2880, %v3033
        %v3111 = vadd.f32 %v2885, %v3035
        %v3112 = vadd.f32 %v2890, %v3038
        %v3113 = vadd.f32 %v2895, %v3040
        %v3114 = vadd.f32 %v2900, %v3043
        %v3115 = vadd.f32 %v2905, %v3045
        %v3116 = vadd.f32 %v2910, %v3048
        %v3117 = vadd.f32 %v2915, %v3050
        %v3118 = vadd.f32 %v2920, %v3053
        %v3119 = vadd.f32 %v2925, %v3055
        %3120 = vst [vmem:[%s340] sm:$0xff] %v3088
        %3121 = vst [vmem:[%s340 + $0x8] sm:$0xff] %v3089
        %3122 = vst [vmem:[%s340 + $0x10] sm:$0xff] %v3090
        %3123 = vst [vmem:[%s340 + $0x18] sm:$0xff] %v3091
        %3124 = vst [vmem:[%s340 + $0x20] sm:$0xff] %v3092
        %3125 = vst [vmem:[%s340 + $0x28] sm:$0xff] %v3093
        %3126 = vst [vmem:[%s340 + $0x30] sm:$0xff] %v3094
        %3127 = vst [vmem:[%s340 + $0x38] sm:$0xff] %v3095
        %3128 = vst [vmem:[%s340 + $0x40] sm:$0xff] %v3096
        %3129 = vst [vmem:[%s340 + $0x48] sm:$0xff] %v3097
        %3130 = vst [vmem:[%s340 + $0x50] sm:$0xff] %v3098
        %3131 = vst [vmem:[%s340 + $0x58] sm:$0xff] %v3099
        %3132 = vst [vmem:[%s340 + $0x60] sm:$0xff] %v3100
        %3133 = vst [vmem:[%s340 + $0x68] sm:$0xff] %v3101
        %3134 = vst [vmem:[%s340 + $0x70] sm:$0xff] %v3102
        %3135 = vst [vmem:[%s340 + $0x78] sm:$0xff] %v3103
        %3136 = vst [vmem:[%s340 + $0x80] sm:$0xff] %v3104
        %3137 = vst [vmem:[%s340 + $0x88] sm:$0xff] %v3105
        %3138 = vst [vmem:[%s340 + $0x90] sm:$0xff] %v3106
        %3139 = vst [vmem:[%s340 + $0x98] sm:$0xff] %v3107
        %3140 = vst [vmem:[%s340 + $0xa0] sm:$0xff] %v3108
        %3141 = vst [vmem:[%s340 + $0xa8] sm:$0xff] %v3109
        %3142 = vst [vmem:[%s340 + $0xb0] sm:$0xff] %v3110
        %3143 = vst [vmem:[%s340 + $0xb8] sm:$0xff] %v3111
        %3144 = vst [vmem:[%s340 + $0xc0] sm:$0xff] %v3112
        %3145 = vst [vmem:[%s340 + $0xc8] sm:$0xff] %v3113
        %3146 = vst [vmem:[%s340 + $0xd0] sm:$0xff] %v3114
        %3147 = vst [vmem:[%s340 + $0xd8] sm:$0xff] %v3115
        %3148 = vst [vmem:[%s340 + $0xe0] sm:$0xff] %v3116
        %3149 = vst [vmem:[%s340 + $0xe8] sm:$0xff] %v3117
        %3150 = vst [vmem:[%s340 + $0xf0] sm:$0xff] %v3118
        %3151 = vst [vmem:[%s340 + $0xf8] sm:$0xff] %v3119
        %s3152 = sand.u32 %s186, 1
        %s3153 = scalar_lea.sflag [#allocation4], %s3152
        %s3154 = sand.u32 %s186, 1
        %s3155 = smul.addr %s3154, 256
        %s3156 = scalar_lea.vmem [#allocation10], %s3155
        // Predicated region
        $region65: #{tpu_custom_call.1} parent=47 // pred_check
          %p3157 = pneg %p196
        $region66: #{tpu_custom_call.1} parent=47 // pred_check_branch
          %3159 = sbr.rel (%p3157) target = $region68
        $region67: #{tpu_custom_call.1} parent=47 // pred_region
          %s3161 = ssub.s32 4096, 4096
          %3162 = vsyncadd %s3153, %s3161
          %s3163 = smul.addr %s26, 32
          %s3164 = smul.addr %s3163, 128
          %s3165 = scalar_lea.hbm %s7, %s3164
          %s3166 = sshll.u32 %s3156, 4
          %s3167 = int_to_ptr.vmem [resolvable:$true] %s3166
          %3172 = dma.vmem_to_hbm [thread:$0]  %s3167, 4096, %s3165, %s3153, 128, 128, 8
        $region68: #{tpu_custom_call.1} parent=47 // pred_fallthru
          _
      $region48: #{tpu_custom_call.1} parent=5 // pred_fallthru
        _
      %p3173 = scmp.le.s32.totalorder 2, %s21
      // Predicated region
      $region69: #{tpu_custom_call.1} parent=5 // pred_check
        %p3174 = pneg %p3173
      $region70: #{tpu_custom_call.1} parent=5 // pred_check_branch
        %3176 = sbr.rel (%p3174) target = $region72
      $region71: #{tpu_custom_call.1} parent=5 // pred_region
        %s3177 = ssub.s32 %s21, 2
        // Predicated region
        $region73: #{tpu_custom_call.1} parent=71 // pred_check
          %p3178 = pneg %p202
        $region74: #{tpu_custom_call.1} parent=71 // pred_check_branch
          %3180 = sbr.rel (%p3178) target = $region76
        $region75: #{tpu_custom_call.1} parent=71 // pred_region
          %s3181 = sand.u32 %s187, 1
          %s3182 = scalar_lea.sflag [#allocation4], %s3181
          %s3183 = sand.u32 %s187, 1
          %s3184 = smul.addr %s3183, 256
          %s3185 = scalar_lea.vmem [#allocation10], %s3184
          %3186 = dma.done %s3182, 4096
        $region76: #{tpu_custom_call.1} parent=71 // pred_fallthru
          _
      $region72: #{tpu_custom_call.1} parent=5 // pred_fallthru
        _
    $region6: #{tpu_custom_call.1} parent=1 // loop_footer
      %s25 = sadd.s32 1, %s21
    $region7: #{tpu_custom_call.1} parent=1 // loop_footer_branch
      %20 = sbr.rel target = $region3
    $region8: #{tpu_custom_call.1} parent=1 // loop_exit
      _
    %3187 = vsyncpa [#allocation3], 1
    %s3188 = scalar_lea.sflag [#allocation3], 1
    %3189 = vsyncpa %s3188, 1
    %3190 = vsyncpa [#allocation6], 1
    %3191 = vsyncpa [#allocation9], 1
    %3192 = vsyncpa [#allocation4], 1
    %s3193 = scalar_lea.sflag [#allocation4], 1
    %3194 = vsyncpa %s3193, 1

</llo_original>
